<compile_context>
chip_gen: v7x
topology: tpu7x:2x2x1
jax: 0.10.0
libtpu: 0.0.40
codegen_flags: <defaults>
</compile_context>

<pallas_src>
import jax
import jax.numpy as jnp
from jax.experimental import pallas as pl
from jax.experimental.pallas import tpu as pltpu


def _make_lstm_encoder_kernel(compute_dtype):
    """Returns the kernel body; `compute_dtype` is the MXU operand dtype."""

    def kernel(emb_ref, lens_ref, wih_ref, whh_ref, b_ref, h_out_ref, c_out_ref):
        # emb_ref : (T*B, E) f32    time-major embedded inputs, flattened over (T, B)
        # lens_ref: (B, 1)  i32     sequence lengths
        # wih_ref : (L, E, 4H)      gate order (i, f, o, g), dtype = compute_dtype
        # whh_ref : (L, H, 4H)      gate order (i, f, o, g), dtype = compute_dtype
        # b_ref   : (L, 1, 4H) f32  b_ih + b_hh, gate order (i, f, o, g)
        # h_out_ref, c_out_ref : (L, B, H) f32
        L, B, H = h_out_ref.shape
        T = emb_ref.shape[0] // B

        lens = lens_ref[...]                      # (B, 1) int32, loaded once
        x2d = emb_ref[...]                        # (T*B, E) f32 layer-input sequence

        for l in range(L):                        # n_layers: small, static -> unrolled
            wih = wih_ref[l]                      # (E, 4H)
            whh = whh_ref[l]                      # (H, 4H)
            b = b_ref[l]                          # (1, 4H)

            # Hoisted batched input projection for the whole sequence (one MXU call),
            # bias folded into the epilogue.  Accumulate in f32.
            xw = jnp.dot(x2d.astype(compute_dtype), wih,
                         preferred_element_type=jnp.float32) + b      # (T*B, 4H) f32

            h = jnp.zeros((B, H), jnp.float32)    # state stays resident in vregs
            c = jnp.zeros((B, H), jnp.float32)
            outs = []
            for t in range(T):                    # fully unrolled serial recurrence
                gates = xw[t * B:(t + 1) * B] + jnp.dot(
                    h.astype(compute_dtype), whh,
                    preferred_element_type=jnp.float32)               # (B, 4H) f32

                # Gate order (i, f, o, g): one sigmoid over (B, 3H), one tanh over (B, H).
                sig = jax.nn.sigmoid(gates[:, :3 * H])
                i_g = sig[:, 0:H]
                f_g = sig[:, H:2 * H]
                o_g = sig[:, 2 * H:3 * H]
                g_g = jnp.tanh(gates[:, 3 * H:])

                c_new = f_g * c + i_g * g_g
                h_new = o_g * jnp.tanh(c_new)

                # Freeze state past the end of each sequence (packed-sequence semantics):
                # a single select per state instead of mul/mul/add blends.
                m = lens > t                      # (B, 1) bool
                h = jnp.where(m, h_new, h)
                c = jnp.where(m, c_new, c)

                if l < L - 1:                     # last layer never feeds anyone
                    outs.append(h)

            if l < L - 1:
                x2d = jnp.concatenate(outs, axis=0)                   # (T*B, H)

            h_out_ref[l] = h
            c_out_ref[l] = c

    return kernel


def encoder_forward(src_data, src_lens, embedding_matrix, w_ih, w_hh, b_ih, b_hh,
                    *, use_bf16_matmul=False):
    """JAX wrapper reproducing Encoder.forward(src_data, src_lens) -> (hidden, cell).

    src_data: (T, B) int32 token ids (time-major), src_lens: (B,) int32.
    w_ih: (L, 4H, E), w_hh: (L, 4H, H), b_ih/b_hh: (L, 4H)  (PyTorch layout, gate
    order i, f, g, o).  Returns hidden, cell of shape (L, B, H).

    `use_bf16_matmul=True` casts the MXU operands to bf16 (recommended on v6e/v7x);
    accumulation and all elementwise gate math stay f32.
    """
    T, B = src_data.shape
    L, four_h, E = w_ih.shape
    H = four_h // 4
    assert E == H, "this kernel stacks layers uniformly; choose emb_dim == hid_dim"

    # Glue (plain JAX): embedding gather + eval-mode dropout (identity).
    emb = jnp.take(embedding_matrix, src_data, axis=0).astype(jnp.float32)   # (T, B, E)
    emb2d = emb.reshape(T * B, E)                                            # (T*B, E)
    lens = src_lens.astype(jnp.int32).reshape(B, 1)                          # (B, 1)

    # Transpose to (in, 4H) and permute gate columns (i, f, g, o) -> (i, f, o, g).
    perm = jnp.concatenate([jnp.arange(0, 2 * H),
                            jnp.arange(3 * H, 4 * H),
                            jnp.arange(2 * H, 3 * H)])
    mm_dtype = jnp.bfloat16 if use_bf16_matmul else jnp.float32
    wih_t = jnp.transpose(w_ih, (0, 2, 1))[:, :, perm].astype(mm_dtype)      # (L, E, 4H)
    whh_t = jnp.transpose(w_hh, (0, 2, 1))[:, :, perm].astype(mm_dtype)      # (L, H, 4H)
    b = (b_ih + b_hh)[:, perm].astype(jnp.float32)[:, None, :]               # (L, 1, 4H)

    # Explicit VMEM budget (v7x has only 64 MiB physical VMEM): inputs + outputs +
    # generous headroom for the per-layer (T*B, 4H) projection and temporaries.
    w_item = 2 if use_bf16_matmul else 4
    est = (emb2d.size * 4 + lens.size * 4
           + wih_t.size * w_item + whh_t.size * w_item + b.size * 4
           + 2 * L * B * H * 4
           + 4 * T * B * 4 * H * 4)
    vmem_limit = max(8 * 1024 * 1024, 2 * int(est))

    vmem = pl.BlockSpec(memory_space=pltpu.MemorySpace.VMEM)
    hidden, cell = pl.pallas_call(
        _make_lstm_encoder_kernel(mm_dtype),
        out_shape=(jax.ShapeDtypeStruct((L, B, H), jnp.float32),
                   jax.ShapeDtypeStruct((L, B, H), jnp.float32)),
        in_specs=[vmem, vmem, vmem, vmem, vmem],
        out_specs=(vmem, vmem),
        compiler_params=pltpu.CompilerParams(vmem_limit_bytes=vmem_limit),
    )(emb2d, lens, wih_t, whh_t, b)
    return hidden, cell


def reference_encoder(src_data, src_lens, embedding_matrix, w_ih, w_hh, b_ih, b_hh):
    """Pure-JAX f32 reference of the packed-sequence LSTM encoder."""
    emb = jnp.take(embedding_matrix, src_data, axis=0).astype(jnp.float32)
    T, B, E = emb.shape
    L, four_h, _ = w_ih.shape
    H = four_h // 4
    x = emb
    hs, cs = [], []
    for l in range(L):
        h = jnp.zeros((B, H), jnp.float32)
        c = jnp.zeros((B, H), jnp.float32)
        outs = []
        for t in range(T):
            gates = x[t] @ w_ih[l].T + b_ih[l] + h @ w_hh[l].T + b_hh[l]
            i = jax.nn.sigmoid(gates[:, 0 * H:1 * H])
            f = jax.nn.sigmoid(gates[:, 1 * H:2 * H])
            g = jnp.tanh(gates[:, 2 * H:3 * H])
            o = jax.nn.sigmoid(gates[:, 3 * H:4 * H])
            c_new = f * c + i * g
            h_new = o * jnp.tanh(c_new)
            m = (t < src_lens).astype(jnp.float32)[:, None]
            h = m * h_new + (1.0 - m) * h
            c = m * c_new + (1.0 - m) * c
            outs.append(m * h_new)
        x = jnp.stack(outs)
        hs.append(h)
        cs.append(c)
    return jnp.stack(hs), jnp.stack(cs)


if __name__ == "__main__":
    # Small shapes implied by the module: vocab=input_dim, emb_dim=hid_dim=32,
    # n_layers=2, seq_len=8, batch=8.
    VOCAB, E, H, L, T, B = 16, 32, 32, 2, 8, 8

    key = jax.random.PRNGKey(0)
    k_emb, k_tok, k_wih, k_whh, k_bih, k_bhh = jax.random.split(key, 6)

    # Pretrained embedding matrix (padding_idx=0 row zeroed, as is conventional).
    embedding_matrix = jax.random.normal(k_emb, (VOCAB, E), dtype=jnp.float32)
    embedding_matrix = embedding_matrix.at[0].set(0.0)

    # LSTM parameters, PyTorch init: U(-1/sqrt(H), 1/sqrt(H)), gate order (i, f, g, o).
    s = 1.0 / jnp.sqrt(jnp.float32(H))
    w_ih = jax.random.uniform(k_wih, (L, 4 * H, E), jnp.float32, -s, s)
    w_hh = jax.random.uniform(k_whh, (L, 4 * H, H), jnp.float32, -s, s)
    b_ih = jax.random.uniform(k_bih, (L, 4 * H), jnp.float32, -s, s)
    b_hh = jax.random.uniform(k_bhh, (L, 4 * H), jnp.float32, -s, s)

    # Sorted-descending lengths (pack_padded_sequence default requires this).
    src_lens = jnp.array([8, 8, 7, 6, 5, 4, 3, 2], dtype=jnp.int32)
    tokens = jax.random.randint(k_tok, (T, B), 1, VOCAB, dtype=jnp.int32)
    pad_mask = jnp.arange(T, dtype=jnp.int32)[:, None] < src_lens[None, :]
    src_data = jnp.where(pad_mask, tokens, 0)  # padding token id = 0

    h_ref, c_ref = reference_encoder(src_data, src_lens, embedding_matrix,
                                     w_ih, w_hh, b_ih, b_hh)

    # f32 MXU operands (exact match path; what v5e should use throughout).
    hidden, cell = encoder_forward(src_data, src_lens, embedding_matrix,
                                   w_ih, w_hh, b_ih, b_hh, use_bf16_matmul=False)
    jax.block_until_ready((hidden, cell))
    assert hidden.shape == (L, B, H) and cell.shape == (L, B, H)
    assert jnp.allclose(hidden, h_ref, atol=1e-5, rtol=1e-5)
    assert jnp.allclose(cell, c_ref, atol=1e-5, rtol=1e-5)

    # bf16 MXU operands (v6e/v7x fast path); elementwise math stays f32.
    hidden_bf, cell_bf = encoder_forward(src_data, src_lens, embedding_matrix,
                                         w_ih, w_hh, b_ih, b_hh, use_bf16_matmul=True)
    jax.block_until_ready((hidden_bf, cell_bf))
    assert jnp.allclose(hidden_bf, h_ref, atol=5e-2, rtol=5e-2)
    assert jnp.allclose(cell_bf, c_ref, atol=5e-2, rtol=5e-2)

    print("KERNEL_OK")
</pallas_src>

<mosaic_0001>
module attributes {stable_mosaic.version = 11 : i64} {
  func.func @kernel(%arg0: memref<64x32xf32, #tpu.memory_space<vmem>>, %arg1: memref<8x1xi32, #tpu.memory_space<vmem>>, %arg2: memref<2x32x128xf32, #tpu.memory_space<vmem>>, %arg3: memref<2x32x128xf32, #tpu.memory_space<vmem>>, %arg4: memref<2x1x128xf32, #tpu.memory_space<vmem>>, %arg5: memref<2x8x32xf32, #tpu.memory_space<vmem>>, %arg6: memref<2x8x32xf32, #tpu.memory_space<vmem>>) attributes {dimension_semantics = [], scalar_prefetch = 0 : i64, scratch_operands = 0 : i64, tpu.core_type = #tpu.core_type<tc>} {
    %c0 = arith.constant 0 : index
    %c0_0 = arith.constant 0 : index
    %0 = vector.load %arg1[%c0, %c0_0] : memref<8x1xi32, #tpu.memory_space<vmem>>, vector<8x1xi32>
    %c0_1 = arith.constant 0 : index
    %c0_2 = arith.constant 0 : index
    %1 = vector.load %arg0[%c0_1, %c0_2] : memref<64x32xf32, #tpu.memory_space<vmem>>, vector<64x32xf32>
    %c0_3 = arith.constant 0 : index
    %c0_4 = arith.constant 0 : index
    %c0_5 = arith.constant 0 : index
    %2 = vector.load %arg2[%c0_3, %c0_4, %c0_5] : memref<2x32x128xf32, #tpu.memory_space<vmem>>, vector<1x32x128xf32>
    %3 = vector.shape_cast %2 : vector<1x32x128xf32> to vector<32x128xf32>
    %c0_6 = arith.constant 0 : index
    %c0_7 = arith.constant 0 : index
    %c0_8 = arith.constant 0 : index
    %4 = vector.load %arg3[%c0_6, %c0_7, %c0_8] : memref<2x32x128xf32, #tpu.memory_space<vmem>>, vector<1x32x128xf32>
    %5 = vector.shape_cast %4 : vector<1x32x128xf32> to vector<32x128xf32>
    %c0_9 = arith.constant 0 : index
    %c0_10 = arith.constant 0 : index
    %c0_11 = arith.constant 0 : index
    %6 = vector.load %arg4[%c0_9, %c0_10, %c0_11] : memref<2x1x128xf32, #tpu.memory_space<vmem>>, vector<1x1x128xf32>
    %7 = vector.shape_cast %6 : vector<1x1x128xf32> to vector<1x128xf32>
    %cst = arith.constant dense<0.000000e+00> : vector<64x128xf32>
    %8 = tpu.matmul %1, %3, %cst {dimension_numbers = #tpu.dot_dimension_numbers<[1], [0], [0], [1], [0, 0, 1, 1], [], []>} : vector<64x32xf32>, vector<32x128xf32>, vector<64x128xf32> -> vector<64x128xf32>
    %9 = vector.broadcast %7 : vector<1x128xf32> to vector<64x128xf32>
    %10 = arith.addf %8, %9 : vector<64x128xf32>
    %cst_12 = arith.constant 0.000000e+00 : f32
    %11 = vector.broadcast %cst_12 : f32 to vector<8x32xf32>
    %cst_13 = arith.constant 0.000000e+00 : f32
    %12 = vector.broadcast %cst_13 : f32 to vector<8x32xf32>
    %13 = vector.extract_strided_slice %10 {offsets = [0, 0], sizes = [8, 128], strides = [1, 1]} : vector<64x128xf32> to vector<8x128xf32>
    %cst_14 = arith.constant dense<0.000000e+00> : vector<8x128xf32>
    %14 = tpu.matmul %11, %5, %cst_14 {dimension_numbers = #tpu.dot_dimension_numbers<[1], [0], [0], [1], [0, 0, 1, 1], [], []>} : vector<8x32xf32>, vector<32x128xf32>, vector<8x128xf32> -> vector<8x128xf32>
    %15 = arith.addf %13, %14 : vector<8x128xf32>
    %16 = vector.extract_strided_slice %15 {offsets = [0, 0], sizes = [8, 96], strides = [1, 1]} : vector<8x128xf32> to vector<8x96xf32>
    %17 = arith.negf %16 : vector<8x96xf32>
    %18 = math.exp %17 : vector<8x96xf32>
    %cst_15 = arith.constant 1.000000e+00 : f32
    %19 = vector.broadcast %cst_15 : f32 to vector<8x96xf32>
    %20 = arith.addf %19, %18 : vector<8x96xf32>
    %21 = arith.divf %19, %20 : vector<8x96xf32>
    %22 = vector.extract_strided_slice %21 {offsets = [0, 0], sizes = [8, 32], strides = [1, 1]} : vector<8x96xf32> to vector<8x32xf32>
    %23 = vector.extract_strided_slice %21 {offsets = [0, 32], sizes = [8, 32], strides = [1, 1]} : vector<8x96xf32> to vector<8x32xf32>
    %24 = vector.extract_strided_slice %21 {offsets = [0, 64], sizes = [8, 32], strides = [1, 1]} : vector<8x96xf32> to vector<8x32xf32>
    %25 = vector.extract_strided_slice %15 {offsets = [0, 96], sizes = [8, 32], strides = [1, 1]} : vector<8x128xf32> to vector<8x32xf32>
    %26 = math.tanh %25 : vector<8x32xf32>
    %27 = arith.mulf %23, %12 : vector<8x32xf32>
    %28 = arith.mulf %22, %26 : vector<8x32xf32>
    %29 = arith.addf %27, %28 : vector<8x32xf32>
    %30 = math.tanh %29 : vector<8x32xf32>
    %31 = arith.mulf %24, %30 : vector<8x32xf32>
    %c0_i32 = arith.constant 0 : i32
    %32 = vector.broadcast %c0_i32 : i32 to vector<8x1xi32>
    %33 = arith.cmpi sgt, %0, %32 : vector<8x1xi32>
    %34 = vector.shape_cast %33 : vector<8x1xi1> to vector<8x1xi1>
    %35 = vector.broadcast %34 : vector<8x1xi1> to vector<8x32xi1>
    %36 = arith.select %35, %31, %11 : vector<8x32xi1>, vector<8x32xf32>
    %37 = vector.shape_cast %33 : vector<8x1xi1> to vector<8x1xi1>
    %38 = vector.broadcast %37 : vector<8x1xi1> to vector<8x32xi1>
    %39 = arith.select %38, %29, %12 : vector<8x32xi1>, vector<8x32xf32>
    %40 = vector.extract_strided_slice %10 {offsets = [8, 0], sizes = [8, 128], strides = [1, 1]} : vector<64x128xf32> to vector<8x128xf32>
    %cst_16 = arith.constant dense<0.000000e+00> : vector<8x128xf32>
    %41 = tpu.matmul %36, %5, %cst_16 {dimension_numbers = #tpu.dot_dimension_numbers<[1], [0], [0], [1], [0, 0, 1, 1], [], []>} : vector<8x32xf32>, vector<32x128xf32>, vector<8x128xf32> -> vector<8x128xf32>
    %42 = arith.addf %40, %41 : vector<8x128xf32>
    %43 = vector.extract_strided_slice %42 {offsets = [0, 0], sizes = [8, 96], strides = [1, 1]} : vector<8x128xf32> to vector<8x96xf32>
    %44 = arith.negf %43 : vector<8x96xf32>
    %45 = math.exp %44 : vector<8x96xf32>
    %cst_17 = arith.constant 1.000000e+00 : f32
    %46 = vector.broadcast %cst_17 : f32 to vector<8x96xf32>
    %47 = arith.addf %46, %45 : vector<8x96xf32>
    %48 = arith.divf %46, %47 : vector<8x96xf32>
    %49 = vector.extract_strided_slice %48 {offsets = [0, 0], sizes = [8, 32], strides = [1, 1]} : vector<8x96xf32> to vector<8x32xf32>
    %50 = vector.extract_strided_slice %48 {offsets = [0, 32], sizes = [8, 32], strides = [1, 1]} : vector<8x96xf32> to vector<8x32xf32>
    %51 = vector.extract_strided_slice %48 {offsets = [0, 64], sizes = [8, 32], strides = [1, 1]} : vector<8x96xf32> to vector<8x32xf32>
    %52 = vector.extract_strided_slice %42 {offsets = [0, 96], sizes = [8, 32], strides = [1, 1]} : vector<8x128xf32> to vector<8x32xf32>
    %53 = math.tanh %52 : vector<8x32xf32>
    %54 = arith.mulf %50, %39 : vector<8x32xf32>
    %55 = arith.mulf %49, %53 : vector<8x32xf32>
    %56 = arith.addf %54, %55 : vector<8x32xf32>
    %57 = math.tanh %56 : vector<8x32xf32>
    %58 = arith.mulf %51, %57 : vector<8x32xf32>
    %c1_i32 = arith.constant 1 : i32
    %59 = vector.broadcast %c1_i32 : i32 to vector<8x1xi32>
    %60 = arith.cmpi sgt, %0, %59 : vector<8x1xi32>
    %61 = vector.shape_cast %60 : vector<8x1xi1> to vector<8x1xi1>
    %62 = vector.broadcast %61 : vector<8x1xi1> to vector<8x32xi1>
    %63 = arith.select %62, %58, %36 : vector<8x32xi1>, vector<8x32xf32>
    %64 = vector.shape_cast %60 : vector<8x1xi1> to vector<8x1xi1>
    %65 = vector.broadcast %64 : vector<8x1xi1> to vector<8x32xi1>
    %66 = arith.select %65, %56, %39 : vector<8x32xi1>, vector<8x32xf32>
    %67 = vector.extract_strided_slice %10 {offsets = [16, 0], sizes = [8, 128], strides = [1, 1]} : vector<64x128xf32> to vector<8x128xf32>
    %cst_18 = arith.constant dense<0.000000e+00> : vector<8x128xf32>
    %68 = tpu.matmul %63, %5, %cst_18 {dimension_numbers = #tpu.dot_dimension_numbers<[1], [0], [0], [1], [0, 0, 1, 1], [], []>} : vector<8x32xf32>, vector<32x128xf32>, vector<8x128xf32> -> vector<8x128xf32>
    %69 = arith.addf %67, %68 : vector<8x128xf32>
    %70 = vector.extract_strided_slice %69 {offsets = [0, 0], sizes = [8, 96], strides = [1, 1]} : vector<8x128xf32> to vector<8x96xf32>
    %71 = arith.negf %70 : vector<8x96xf32>
    %72 = math.exp %71 : vector<8x96xf32>
    %cst_19 = arith.constant 1.000000e+00 : f32
    %73 = vector.broadcast %cst_19 : f32 to vector<8x96xf32>
    %74 = arith.addf %73, %72 : vector<8x96xf32>
    %75 = arith.divf %73, %74 : vector<8x96xf32>
    %76 = vector.extract_strided_slice %75 {offsets = [0, 0], sizes = [8, 32], strides = [1, 1]} : vector<8x96xf32> to vector<8x32xf32>
    %77 = vector.extract_strided_slice %75 {offsets = [0, 32], sizes = [8, 32], strides = [1, 1]} : vector<8x96xf32> to vector<8x32xf32>
    %78 = vector.extract_strided_slice %75 {offsets = [0, 64], sizes = [8, 32], strides = [1, 1]} : vector<8x96xf32> to vector<8x32xf32>
    %79 = vector.extract_strided_slice %69 {offsets = [0, 96], sizes = [8, 32], strides = [1, 1]} : vector<8x128xf32> to vector<8x32xf32>
    %80 = math.tanh %79 : vector<8x32xf32>
    %81 = arith.mulf %77, %66 : vector<8x32xf32>
    %82 = arith.mulf %76, %80 : vector<8x32xf32>
    %83 = arith.addf %81, %82 : vector<8x32xf32>
    %84 = math.tanh %83 : vector<8x32xf32>
    %85 = arith.mulf %78, %84 : vector<8x32xf32>
    %c2_i32 = arith.constant 2 : i32
    %86 = vector.broadcast %c2_i32 : i32 to vector<8x1xi32>
    %87 = arith.cmpi sgt, %0, %86 : vector<8x1xi32>
    %88 = vector.shape_cast %87 : vector<8x1xi1> to vector<8x1xi1>
    %89 = vector.broadcast %88 : vector<8x1xi1> to vector<8x32xi1>
    %90 = arith.select %89, %85, %63 : vector<8x32xi1>, vector<8x32xf32>
    %91 = vector.shape_cast %87 : vector<8x1xi1> to vector<8x1xi1>
    %92 = vector.broadcast %91 : vector<8x1xi1> to vector<8x32xi1>
    %93 = arith.select %92, %83, %66 : vector<8x32xi1>, vector<8x32xf32>
    %94 = vector.extract_strided_slice %10 {offsets = [24, 0], sizes = [8, 128], strides = [1, 1]} : vector<64x128xf32> to vector<8x128xf32>
    %cst_20 = arith.constant dense<0.000000e+00> : vector<8x128xf32>
    %95 = tpu.matmul %90, %5, %cst_20 {dimension_numbers = #tpu.dot_dimension_numbers<[1], [0], [0], [1], [0, 0, 1, 1], [], []>} : vector<8x32xf32>, vector<32x128xf32>, vector<8x128xf32> -> vector<8x128xf32>
    %96 = arith.addf %94, %95 : vector<8x128xf32>
    %97 = vector.extract_strided_slice %96 {offsets = [0, 0], sizes = [8, 96], strides = [1, 1]} : vector<8x128xf32> to vector<8x96xf32>
    %98 = arith.negf %97 : vector<8x96xf32>
    %99 = math.exp %98 : vector<8x96xf32>
    %cst_21 = arith.constant 1.000000e+00 : f32
    %100 = vector.broadcast %cst_21 : f32 to vector<8x96xf32>
    %101 = arith.addf %100, %99 : vector<8x96xf32>
    %102 = arith.divf %100, %101 : vector<8x96xf32>
    %103 = vector.extract_strided_slice %102 {offsets = [0, 0], sizes = [8, 32], strides = [1, 1]} : vector<8x96xf32> to vector<8x32xf32>
    %104 = vector.extract_strided_slice %102 {offsets = [0, 32], sizes = [8, 32], strides = [1, 1]} : vector<8x96xf32> to vector<8x32xf32>
    %105 = vector.extract_strided_slice %102 {offsets = [0, 64], sizes = [8, 32], strides = [1, 1]} : vector<8x96xf32> to vector<8x32xf32>
    %106 = vector.extract_strided_slice %96 {offsets = [0, 96], sizes = [8, 32], strides = [1, 1]} : vector<8x128xf32> to vector<8x32xf32>
    %107 = math.tanh %106 : vector<8x32xf32>
    %108 = arith.mulf %104, %93 : vector<8x32xf32>
    %109 = arith.mulf %103, %107 : vector<8x32xf32>
    %110 = arith.addf %108, %109 : vector<8x32xf32>
    %111 = math.tanh %110 : vector<8x32xf32>
    %112 = arith.mulf %105, %111 : vector<8x32xf32>
    %c3_i32 = arith.constant 3 : i32
    %113 = vector.broadcast %c3_i32 : i32 to vector<8x1xi32>
    %114 = arith.cmpi sgt, %0, %113 : vector<8x1xi32>
    %115 = vector.shape_cast %114 : vector<8x1xi1> to vector<8x1xi1>
    %116 = vector.broadcast %115 : vector<8x1xi1> to vector<8x32xi1>
    %117 = arith.select %116, %112, %90 : vector<8x32xi1>, vector<8x32xf32>
    %118 = vector.shape_cast %114 : vector<8x1xi1> to vector<8x1xi1>
    %119 = vector.broadcast %118 : vector<8x1xi1> to vector<8x32xi1>
    %120 = arith.select %119, %110, %93 : vector<8x32xi1>, vector<8x32xf32>
    %121 = vector.extract_strided_slice %10 {offsets = [32, 0], sizes = [8, 128], strides = [1, 1]} : vector<64x128xf32> to vector<8x128xf32>
    %cst_22 = arith.constant dense<0.000000e+00> : vector<8x128xf32>
    %122 = tpu.matmul %117, %5, %cst_22 {dimension_numbers = #tpu.dot_dimension_numbers<[1], [0], [0], [1], [0, 0, 1, 1], [], []>} : vector<8x32xf32>, vector<32x128xf32>, vector<8x128xf32> -> vector<8x128xf32>
    %123 = arith.addf %121, %122 : vector<8x128xf32>
    %124 = vector.extract_strided_slice %123 {offsets = [0, 0], sizes = [8, 96], strides = [1, 1]} : vector<8x128xf32> to vector<8x96xf32>
    %125 = arith.negf %124 : vector<8x96xf32>
    %126 = math.exp %125 : vector<8x96xf32>
    %cst_23 = arith.constant 1.000000e+00 : f32
    %127 = vector.broadcast %cst_23 : f32 to vector<8x96xf32>
    %128 = arith.addf %127, %126 : vector<8x96xf32>
    %129 = arith.divf %127, %128 : vector<8x96xf32>
    %130 = vector.extract_strided_slice %129 {offsets = [0, 0], sizes = [8, 32], strides = [1, 1]} : vector<8x96xf32> to vector<8x32xf32>
    %131 = vector.extract_strided_slice %129 {offsets = [0, 32], sizes = [8, 32], strides = [1, 1]} : vector<8x96xf32> to vector<8x32xf32>
    %132 = vector.extract_strided_slice %129 {offsets = [0, 64], sizes = [8, 32], strides = [1, 1]} : vector<8x96xf32> to vector<8x32xf32>
    %133 = vector.extract_strided_slice %123 {offsets = [0, 96], sizes = [8, 32], strides = [1, 1]} : vector<8x128xf32> to vector<8x32xf32>
    %134 = math.tanh %133 : vector<8x32xf32>
    %135 = arith.mulf %131, %120 : vector<8x32xf32>
    %136 = arith.mulf %130, %134 : vector<8x32xf32>
    %137 = arith.addf %135, %136 : vector<8x32xf32>
    %138 = math.tanh %137 : vector<8x32xf32>
    %139 = arith.mulf %132, %138 : vector<8x32xf32>
    %c4_i32 = arith.constant 4 : i32
    %140 = vector.broadcast %c4_i32 : i32 to vector<8x1xi32>
    %141 = arith.cmpi sgt, %0, %140 : vector<8x1xi32>
    %142 = vector.shape_cast %141 : vector<8x1xi1> to vector<8x1xi1>
    %143 = vector.broadcast %142 : vector<8x1xi1> to vector<8x32xi1>
    %144 = arith.select %143, %139, %117 : vector<8x32xi1>, vector<8x32xf32>
    %145 = vector.shape_cast %141 : vector<8x1xi1> to vector<8x1xi1>
    %146 = vector.broadcast %145 : vector<8x1xi1> to vector<8x32xi1>
    %147 = arith.select %146, %137, %120 : vector<8x32xi1>, vector<8x32xf32>
    %148 = vector.extract_strided_slice %10 {offsets = [40, 0], sizes = [8, 128], strides = [1, 1]} : vector<64x128xf32> to vector<8x128xf32>
    %cst_24 = arith.constant dense<0.000000e+00> : vector<8x128xf32>
    %149 = tpu.matmul %144, %5, %cst_24 {dimension_numbers = #tpu.dot_dimension_numbers<[1], [0], [0], [1], [0, 0, 1, 1], [], []>} : vector<8x32xf32>, vector<32x128xf32>, vector<8x128xf32> -> vector<8x128xf32>
    %150 = arith.addf %148, %149 : vector<8x128xf32>
    %151 = vector.extract_strided_slice %150 {offsets = [0, 0], sizes = [8, 96], strides = [1, 1]} : vector<8x128xf32> to vector<8x96xf32>
    %152 = arith.negf %151 : vector<8x96xf32>
    %153 = math.exp %152 : vector<8x96xf32>
    %cst_25 = arith.constant 1.000000e+00 : f32
    %154 = vector.broadcast %cst_25 : f32 to vector<8x96xf32>
    %155 = arith.addf %154, %153 : vector<8x96xf32>
    %156 = arith.divf %154, %155 : vector<8x96xf32>
    %157 = vector.extract_strided_slice %156 {offsets = [0, 0], sizes = [8, 32], strides = [1, 1]} : vector<8x96xf32> to vector<8x32xf32>
    %158 = vector.extract_strided_slice %156 {offsets = [0, 32], sizes = [8, 32], strides = [1, 1]} : vector<8x96xf32> to vector<8x32xf32>
    %159 = vector.extract_strided_slice %156 {offsets = [0, 64], sizes = [8, 32], strides = [1, 1]} : vector<8x96xf32> to vector<8x32xf32>
    %160 = vector.extract_strided_slice %150 {offsets = [0, 96], sizes = [8, 32], strides = [1, 1]} : vector<8x128xf32> to vector<8x32xf32>
    %161 = math.tanh %160 : vector<8x32xf32>
    %162 = arith.mulf %158, %147 : vector<8x32xf32>
    %163 = arith.mulf %157, %161 : vector<8x32xf32>
    %164 = arith.addf %162, %163 : vector<8x32xf32>
    %165 = math.tanh %164 : vector<8x32xf32>
    %166 = arith.mulf %159, %165 : vector<8x32xf32>
    %c5_i32 = arith.constant 5 : i32
    %167 = vector.broadcast %c5_i32 : i32 to vector<8x1xi32>
    %168 = arith.cmpi sgt, %0, %167 : vector<8x1xi32>
    %169 = vector.shape_cast %168 : vector<8x1xi1> to vector<8x1xi1>
    %170 = vector.broadcast %169 : vector<8x1xi1> to vector<8x32xi1>
    %171 = arith.select %170, %166, %144 : vector<8x32xi1>, vector<8x32xf32>
    %172 = vector.shape_cast %168 : vector<8x1xi1> to vector<8x1xi1>
    %173 = vector.broadcast %172 : vector<8x1xi1> to vector<8x32xi1>
    %174 = arith.select %173, %164, %147 : vector<8x32xi1>, vector<8x32xf32>
    %175 = vector.extract_strided_slice %10 {offsets = [48, 0], sizes = [8, 128], strides = [1, 1]} : vector<64x128xf32> to vector<8x128xf32>
    %cst_26 = arith.constant dense<0.000000e+00> : vector<8x128xf32>
    %176 = tpu.matmul %171, %5, %cst_26 {dimension_numbers = #tpu.dot_dimension_numbers<[1], [0], [0], [1], [0, 0, 1, 1], [], []>} : vector<8x32xf32>, vector<32x128xf32>, vector<8x128xf32> -> vector<8x128xf32>
    %177 = arith.addf %175, %176 : vector<8x128xf32>
    %178 = vector.extract_strided_slice %177 {offsets = [0, 0], sizes = [8, 96], strides = [1, 1]} : vector<8x128xf32> to vector<8x96xf32>
    %179 = arith.negf %178 : vector<8x96xf32>
    %180 = math.exp %179 : vector<8x96xf32>
    %cst_27 = arith.constant 1.000000e+00 : f32
    %181 = vector.broadcast %cst_27 : f32 to vector<8x96xf32>
    %182 = arith.addf %181, %180 : vector<8x96xf32>
    %183 = arith.divf %181, %182 : vector<8x96xf32>
    %184 = vector.extract_strided_slice %183 {offsets = [0, 0], sizes = [8, 32], strides = [1, 1]} : vector<8x96xf32> to vector<8x32xf32>
    %185 = vector.extract_strided_slice %183 {offsets = [0, 32], sizes = [8, 32], strides = [1, 1]} : vector<8x96xf32> to vector<8x32xf32>
    %186 = vector.extract_strided_slice %183 {offsets = [0, 64], sizes = [8, 32], strides = [1, 1]} : vector<8x96xf32> to vector<8x32xf32>
    %187 = vector.extract_strided_slice %177 {offsets = [0, 96], sizes = [8, 32], strides = [1, 1]} : vector<8x128xf32> to vector<8x32xf32>
    %188 = math.tanh %187 : vector<8x32xf32>
    %189 = arith.mulf %185, %174 : vector<8x32xf32>
    %190 = arith.mulf %184, %188 : vector<8x32xf32>
    %191 = arith.addf %189, %190 : vector<8x32xf32>
    %192 = math.tanh %191 : vector<8x32xf32>
    %193 = arith.mulf %186, %192 : vector<8x32xf32>
    %c6_i32 = arith.constant 6 : i32
    %194 = vector.broadcast %c6_i32 : i32 to vector<8x1xi32>
    %195 = arith.cmpi sgt, %0, %194 : vector<8x1xi32>
    %196 = vector.shape_cast %195 : vector<8x1xi1> to vector<8x1xi1>
    %197 = vector.broadcast %196 : vector<8x1xi1> to vector<8x32xi1>
    %198 = arith.select %197, %193, %171 : vector<8x32xi1>, vector<8x32xf32>
    %199 = vector.shape_cast %195 : vector<8x1xi1> to vector<8x1xi1>
    %200 = vector.broadcast %199 : vector<8x1xi1> to vector<8x32xi1>
    %201 = arith.select %200, %191, %174 : vector<8x32xi1>, vector<8x32xf32>
    %202 = vector.extract_strided_slice %10 {offsets = [56, 0], sizes = [8, 128], strides = [1, 1]} : vector<64x128xf32> to vector<8x128xf32>
    %cst_28 = arith.constant dense<0.000000e+00> : vector<8x128xf32>
    %203 = tpu.matmul %198, %5, %cst_28 {dimension_numbers = #tpu.dot_dimension_numbers<[1], [0], [0], [1], [0, 0, 1, 1], [], []>} : vector<8x32xf32>, vector<32x128xf32>, vector<8x128xf32> -> vector<8x128xf32>
    %204 = arith.addf %202, %203 : vector<8x128xf32>
    %205 = vector.extract_strided_slice %204 {offsets = [0, 0], sizes = [8, 96], strides = [1, 1]} : vector<8x128xf32> to vector<8x96xf32>
    %206 = arith.negf %205 : vector<8x96xf32>
    %207 = math.exp %206 : vector<8x96xf32>
    %cst_29 = arith.constant 1.000000e+00 : f32
    %208 = vector.broadcast %cst_29 : f32 to vector<8x96xf32>
    %209 = arith.addf %208, %207 : vector<8x96xf32>
    %210 = arith.divf %208, %209 : vector<8x96xf32>
    %211 = vector.extract_strided_slice %210 {offsets = [0, 0], sizes = [8, 32], strides = [1, 1]} : vector<8x96xf32> to vector<8x32xf32>
    %212 = vector.extract_strided_slice %210 {offsets = [0, 32], sizes = [8, 32], strides = [1, 1]} : vector<8x96xf32> to vector<8x32xf32>
    %213 = vector.extract_strided_slice %210 {offsets = [0, 64], sizes = [8, 32], strides = [1, 1]} : vector<8x96xf32> to vector<8x32xf32>
    %214 = vector.extract_strided_slice %204 {offsets = [0, 96], sizes = [8, 32], strides = [1, 1]} : vector<8x128xf32> to vector<8x32xf32>
    %215 = math.tanh %214 : vector<8x32xf32>
    %216 = arith.mulf %212, %201 : vector<8x32xf32>
    %217 = arith.mulf %211, %215 : vector<8x32xf32>
    %218 = arith.addf %216, %217 : vector<8x32xf32>
    %219 = math.tanh %218 : vector<8x32xf32>
    %220 = arith.mulf %213, %219 : vector<8x32xf32>
    %c7_i32 = arith.constant 7 : i32
    %221 = vector.broadcast %c7_i32 : i32 to vector<8x1xi32>
    %222 = arith.cmpi sgt, %0, %221 : vector<8x1xi32>
    %223 = vector.shape_cast %222 : vector<8x1xi1> to vector<8x1xi1>
    %224 = vector.broadcast %223 : vector<8x1xi1> to vector<8x32xi1>
    %225 = arith.select %224, %220, %198 : vector<8x32xi1>, vector<8x32xf32>
    %226 = vector.shape_cast %222 : vector<8x1xi1> to vector<8x1xi1>
    %227 = vector.broadcast %226 : vector<8x1xi1> to vector<8x32xi1>
    %228 = arith.select %227, %218, %201 : vector<8x32xi1>, vector<8x32xf32>
    %229 = tpu.concatenate %36, %63, %90, %117, %144, %171, %198, %225 in 0 : vector<8x32xf32>, vector<8x32xf32>, vector<8x32xf32>, vector<8x32xf32>, vector<8x32xf32>, vector<8x32xf32>, vector<8x32xf32>, vector<8x32xf32> -> vector<64x32xf32>
    %c0_30 = arith.constant 0 : index
    %c0_31 = arith.constant 0 : index
    %c0_32 = arith.constant 0 : index
    %230 = vector.load %arg5[%c0_30, %c0_31, %c0_32] : memref<2x8x32xf32, #tpu.memory_space<vmem>>, vector<1x8x32xf32>
    %231 = vector.shape_cast %230 : vector<1x8x32xf32> to vector<8x32xf32>
    %232 = vector.shape_cast %225 : vector<8x32xf32> to vector<1x8x32xf32>
    tpu.vector_store %arg5[%c0_30, %c0_31, %c0_32], %232 {strides = array<i32>} : memref<2x8x32xf32, #tpu.memory_space<vmem>>, vector<1x8x32xf32>,
    %c0_33 = arith.constant 0 : index
    %c0_34 = arith.constant 0 : index
    %c0_35 = arith.constant 0 : index
    %233 = vector.load %arg6[%c0_33, %c0_34, %c0_35] : memref<2x8x32xf32, #tpu.memory_space<vmem>>, vector<1x8x32xf32>
    %234 = vector.shape_cast %233 : vector<1x8x32xf32> to vector<8x32xf32>
    %235 = vector.shape_cast %228 : vector<8x32xf32> to vector<1x8x32xf32>
    tpu.vector_store %arg6[%c0_33, %c0_34, %c0_35], %235 {strides = array<i32>} : memref<2x8x32xf32, #tpu.memory_space<vmem>>, vector<1x8x32xf32>,
    %c1 = arith.constant 1 : index
    %c0_36 = arith.constant 0 : index
    %c0_37 = arith.constant 0 : index
    %236 = vector.load %arg2[%c1, %c0_36, %c0_37] : memref<2x32x128xf32, #tpu.memory_space<vmem>>, vector<1x32x128xf32>
    %237 = vector.shape_cast %236 : vector<1x32x128xf32> to vector<32x128xf32>
    %c1_38 = arith.constant 1 : index
    %c0_39 = arith.constant 0 : index
    %c0_40 = arith.constant 0 : index
    %238 = vector.load %arg3[%c1_38, %c0_39, %c0_40] : memref<2x32x128xf32, #tpu.memory_space<vmem>>, vector<1x32x128xf32>
    %239 = vector.shape_cast %238 : vector<1x32x128xf32> to vector<32x128xf32>
    %c1_41 = arith.constant 1 : index
    %c0_42 = arith.constant 0 : index
    %c0_43 = arith.constant 0 : index
    %240 = vector.load %arg4[%c1_41, %c0_42, %c0_43] : memref<2x1x128xf32, #tpu.memory_space<vmem>>, vector<1x1x128xf32>
    %241 = vector.shape_cast %240 : vector<1x1x128xf32> to vector<1x128xf32>
    %cst_44 = arith.constant dense<0.000000e+00> : vector<64x128xf32>
    %242 = tpu.matmul %229, %237, %cst_44 {dimension_numbers = #tpu.dot_dimension_numbers<[1], [0], [0], [1], [0, 0, 1, 1], [], []>} : vector<64x32xf32>, vector<32x128xf32>, vector<64x128xf32> -> vector<64x128xf32>
    %243 = vector.broadcast %241 : vector<1x128xf32> to vector<64x128xf32>
    %244 = arith.addf %242, %243 : vector<64x128xf32>
    %cst_45 = arith.constant 0.000000e+00 : f32
    %245 = vector.broadcast %cst_45 : f32 to vector<8x32xf32>
    %cst_46 = arith.constant 0.000000e+00 : f32
    %246 = vector.broadcast %cst_46 : f32 to vector<8x32xf32>
    %247 = vector.extract_strided_slice %244 {offsets = [0, 0], sizes = [8, 128], strides = [1, 1]} : vector<64x128xf32> to vector<8x128xf32>
    %cst_47 = arith.constant dense<0.000000e+00> : vector<8x128xf32>
    %248 = tpu.matmul %245, %239, %cst_47 {dimension_numbers = #tpu.dot_dimension_numbers<[1], [0], [0], [1], [0, 0, 1, 1], [], []>} : vector<8x32xf32>, vector<32x128xf32>, vector<8x128xf32> -> vector<8x128xf32>
    %249 = arith.addf %247, %248 : vector<8x128xf32>
    %250 = vector.extract_strided_slice %249 {offsets = [0, 0], sizes = [8, 96], strides = [1, 1]} : vector<8x128xf32> to vector<8x96xf32>
    %251 = arith.negf %250 : vector<8x96xf32>
    %252 = math.exp %251 : vector<8x96xf32>
    %cst_48 = arith.constant 1.000000e+00 : f32
    %253 = vector.broadcast %cst_48 : f32 to vector<8x96xf32>
    %254 = arith.addf %253, %252 : vector<8x96xf32>
    %255 = arith.divf %253, %254 : vector<8x96xf32>
    %256 = vector.extract_strided_slice %255 {offsets = [0, 0], sizes = [8, 32], strides = [1, 1]} : vector<8x96xf32> to vector<8x32xf32>
    %257 = vector.extract_strided_slice %255 {offsets = [0, 32], sizes = [8, 32], strides = [1, 1]} : vector<8x96xf32> to vector<8x32xf32>
    %258 = vector.extract_strided_slice %255 {offsets = [0, 64], sizes = [8, 32], strides = [1, 1]} : vector<8x96xf32> to vector<8x32xf32>
    %259 = vector.extract_strided_slice %249 {offsets = [0, 96], sizes = [8, 32], strides = [1, 1]} : vector<8x128xf32> to vector<8x32xf32>
    %260 = math.tanh %259 : vector<8x32xf32>
    %261 = arith.mulf %257, %246 : vector<8x32xf32>
    %262 = arith.mulf %256, %260 : vector<8x32xf32>
    %263 = arith.addf %261, %262 : vector<8x32xf32>
    %264 = math.tanh %263 : vector<8x32xf32>
    %265 = arith.mulf %258, %264 : vector<8x32xf32>
    %c0_i32_49 = arith.constant 0 : i32
    %266 = vector.broadcast %c0_i32_49 : i32 to vector<8x1xi32>
    %267 = arith.cmpi sgt, %0, %266 : vector<8x1xi32>
    %268 = vector.shape_cast %267 : vector<8x1xi1> to vector<8x1xi1>
    %269 = vector.broadcast %268 : vector<8x1xi1> to vector<8x32xi1>
    %270 = arith.select %269, %265, %245 : vector<8x32xi1>, vector<8x32xf32>
    %271 = vector.shape_cast %267 : vector<8x1xi1> to vector<8x1xi1>
    %272 = vector.broadcast %271 : vector<8x1xi1> to vector<8x32xi1>
    %273 = arith.select %272, %263, %246 : vector<8x32xi1>, vector<8x32xf32>
    %274 = vector.extract_strided_slice %244 {offsets = [8, 0], sizes = [8, 128], strides = [1, 1]} : vector<64x128xf32> to vector<8x128xf32>
    %cst_50 = arith.constant dense<0.000000e+00> : vector<8x128xf32>
    %275 = tpu.matmul %270, %239, %cst_50 {dimension_numbers = #tpu.dot_dimension_numbers<[1], [0], [0], [1], [0, 0, 1, 1], [], []>} : vector<8x32xf32>, vector<32x128xf32>, vector<8x128xf32> -> vector<8x128xf32>
    %276 = arith.addf %274, %275 : vector<8x128xf32>
    %277 = vector.extract_strided_slice %276 {offsets = [0, 0], sizes = [8, 96], strides = [1, 1]} : vector<8x128xf32> to vector<8x96xf32>
    %278 = arith.negf %277 : vector<8x96xf32>
    %279 = math.exp %278 : vector<8x96xf32>
    %cst_51 = arith.constant 1.000000e+00 : f32
    %280 = vector.broadcast %cst_51 : f32 to vector<8x96xf32>
    %281 = arith.addf %280, %279 : vector<8x96xf32>
    %282 = arith.divf %280, %281 : vector<8x96xf32>
    %283 = vector.extract_strided_slice %282 {offsets = [0, 0], sizes = [8, 32], strides = [1, 1]} : vector<8x96xf32> to vector<8x32xf32>
    %284 = vector.extract_strided_slice %282 {offsets = [0, 32], sizes = [8, 32], strides = [1, 1]} : vector<8x96xf32> to vector<8x32xf32>
    %285 = vector.extract_strided_slice %282 {offsets = [0, 64], sizes = [8, 32], strides = [1, 1]} : vector<8x96xf32> to vector<8x32xf32>
    %286 = vector.extract_strided_slice %276 {offsets = [0, 96], sizes = [8, 32], strides = [1, 1]} : vector<8x128xf32> to vector<8x32xf32>
    %287 = math.tanh %286 : vector<8x32xf32>
    %288 = arith.mulf %284, %273 : vector<8x32xf32>
    %289 = arith.mulf %283, %287 : vector<8x32xf32>
    %290 = arith.addf %288, %289 : vector<8x32xf32>
    %291 = math.tanh %290 : vector<8x32xf32>
    %292 = arith.mulf %285, %291 : vector<8x32xf32>
    %c1_i32_52 = arith.constant 1 : i32
    %293 = vector.broadcast %c1_i32_52 : i32 to vector<8x1xi32>
    %294 = arith.cmpi sgt, %0, %293 : vector<8x1xi32>
    %295 = vector.shape_cast %294 : vector<8x1xi1> to vector<8x1xi1>
    %296 = vector.broadcast %295 : vector<8x1xi1> to vector<8x32xi1>
    %297 = arith.select %296, %292, %270 : vector<8x32xi1>, vector<8x32xf32>
    %298 = vector.shape_cast %294 : vector<8x1xi1> to vector<8x1xi1>
    %299 = vector.broadcast %298 : vector<8x1xi1> to vector<8x32xi1>
    %300 = arith.select %299, %290, %273 : vector<8x32xi1>, vector<8x32xf32>
    %301 = vector.extract_strided_slice %244 {offsets = [16, 0], sizes = [8, 128], strides = [1, 1]} : vector<64x128xf32> to vector<8x128xf32>
    %cst_53 = arith.constant dense<0.000000e+00> : vector<8x128xf32>
    %302 = tpu.matmul %297, %239, %cst_53 {dimension_numbers = #tpu.dot_dimension_numbers<[1], [0], [0], [1], [0, 0, 1, 1], [], []>} : vector<8x32xf32>, vector<32x128xf32>, vector<8x128xf32> -> vector<8x128xf32>
    %303 = arith.addf %301, %302 : vector<8x128xf32>
    %304 = vector.extract_strided_slice %303 {offsets = [0, 0], sizes = [8, 96], strides = [1, 1]} : vector<8x128xf32> to vector<8x96xf32>
    %305 = arith.negf %304 : vector<8x96xf32>
    %306 = math.exp %305 : vector<8x96xf32>
    %cst_54 = arith.constant 1.000000e+00 : f32
    %307 = vector.broadcast %cst_54 : f32 to vector<8x96xf32>
    %308 = arith.addf %307, %306 : vector<8x96xf32>
    %309 = arith.divf %307, %308 : vector<8x96xf32>
    %310 = vector.extract_strided_slice %309 {offsets = [0, 0], sizes = [8, 32], strides = [1, 1]} : vector<8x96xf32> to vector<8x32xf32>
    %311 = vector.extract_strided_slice %309 {offsets = [0, 32], sizes = [8, 32], strides = [1, 1]} : vector<8x96xf32> to vector<8x32xf32>
    %312 = vector.extract_strided_slice %309 {offsets = [0, 64], sizes = [8, 32], strides = [1, 1]} : vector<8x96xf32> to vector<8x32xf32>
    %313 = vector.extract_strided_slice %303 {offsets = [0, 96], sizes = [8, 32], strides = [1, 1]} : vector<8x128xf32> to vector<8x32xf32>
    %314 = math.tanh %313 : vector<8x32xf32>
    %315 = arith.mulf %311, %300 : vector<8x32xf32>
    %316 = arith.mulf %310, %314 : vector<8x32xf32>
    %317 = arith.addf %315, %316 : vector<8x32xf32>
    %318 = math.tanh %317 : vector<8x32xf32>
    %319 = arith.mulf %312, %318 : vector<8x32xf32>
    %c2_i32_55 = arith.constant 2 : i32
    %320 = vector.broadcast %c2_i32_55 : i32 to vector<8x1xi32>
    %321 = arith.cmpi sgt, %0, %320 : vector<8x1xi32>
    %322 = vector.shape_cast %321 : vector<8x1xi1> to vector<8x1xi1>
    %323 = vector.broadcast %322 : vector<8x1xi1> to vector<8x32xi1>
    %324 = arith.select %323, %319, %297 : vector<8x32xi1>, vector<8x32xf32>
    %325 = vector.shape_cast %321 : vector<8x1xi1> to vector<8x1xi1>
    %326 = vector.broadcast %325 : vector<8x1xi1> to vector<8x32xi1>
    %327 = arith.select %326, %317, %300 : vector<8x32xi1>, vector<8x32xf32>
    %328 = vector.extract_strided_slice %244 {offsets = [24, 0], sizes = [8, 128], strides = [1, 1]} : vector<64x128xf32> to vector<8x128xf32>
    %cst_56 = arith.constant dense<0.000000e+00> : vector<8x128xf32>
    %329 = tpu.matmul %324, %239, %cst_56 {dimension_numbers = #tpu.dot_dimension_numbers<[1], [0], [0], [1], [0, 0, 1, 1], [], []>} : vector<8x32xf32>, vector<32x128xf32>, vector<8x128xf32> -> vector<8x128xf32>
    %330 = arith.addf %328, %329 : vector<8x128xf32>
    %331 = vector.extract_strided_slice %330 {offsets = [0, 0], sizes = [8, 96], strides = [1, 1]} : vector<8x128xf32> to vector<8x96xf32>
    %332 = arith.negf %331 : vector<8x96xf32>
    %333 = math.exp %332 : vector<8x96xf32>
    %cst_57 = arith.constant 1.000000e+00 : f32
    %334 = vector.broadcast %cst_57 : f32 to vector<8x96xf32>
    %335 = arith.addf %334, %333 : vector<8x96xf32>
    %336 = arith.divf %334, %335 : vector<8x96xf32>
    %337 = vector.extract_strided_slice %336 {offsets = [0, 0], sizes = [8, 32], strides = [1, 1]} : vector<8x96xf32> to vector<8x32xf32>
    %338 = vector.extract_strided_slice %336 {offsets = [0, 32], sizes = [8, 32], strides = [1, 1]} : vector<8x96xf32> to vector<8x32xf32>
    %339 = vector.extract_strided_slice %336 {offsets = [0, 64], sizes = [8, 32], strides = [1, 1]} : vector<8x96xf32> to vector<8x32xf32>
    %340 = vector.extract_strided_slice %330 {offsets = [0, 96], sizes = [8, 32], strides = [1, 1]} : vector<8x128xf32> to vector<8x32xf32>
    %341 = math.tanh %340 : vector<8x32xf32>
    %342 = arith.mulf %338, %327 : vector<8x32xf32>
    %343 = arith.mulf %337, %341 : vector<8x32xf32>
    %344 = arith.addf %342, %343 : vector<8x32xf32>
    %345 = math.tanh %344 : vector<8x32xf32>
    %346 = arith.mulf %339, %345 : vector<8x32xf32>
    %c3_i32_58 = arith.constant 3 : i32
    %347 = vector.broadcast %c3_i32_58 : i32 to vector<8x1xi32>
    %348 = arith.cmpi sgt, %0, %347 : vector<8x1xi32>
    %349 = vector.shape_cast %348 : vector<8x1xi1> to vector<8x1xi1>
    %350 = vector.broadcast %349 : vector<8x1xi1> to vector<8x32xi1>
    %351 = arith.select %350, %346, %324 : vector<8x32xi1>, vector<8x32xf32>
    %352 = vector.shape_cast %348 : vector<8x1xi1> to vector<8x1xi1>
    %353 = vector.broadcast %352 : vector<8x1xi1> to vector<8x32xi1>
    %354 = arith.select %353, %344, %327 : vector<8x32xi1>, vector<8x32xf32>
    %355 = vector.extract_strided_slice %244 {offsets = [32, 0], sizes = [8, 128], strides = [1, 1]} : vector<64x128xf32> to vector<8x128xf32>
    %cst_59 = arith.constant dense<0.000000e+00> : vector<8x128xf32>
    %356 = tpu.matmul %351, %239, %cst_59 {dimension_numbers = #tpu.dot_dimension_numbers<[1], [0], [0], [1], [0, 0, 1, 1], [], []>} : vector<8x32xf32>, vector<32x128xf32>, vector<8x128xf32> -> vector<8x128xf32>
    %357 = arith.addf %355, %356 : vector<8x128xf32>
    %358 = vector.extract_strided_slice %357 {offsets = [0, 0], sizes = [8, 96], strides = [1, 1]} : vector<8x128xf32> to vector<8x96xf32>
    %359 = arith.negf %358 : vector<8x96xf32>
    %360 = math.exp %359 : vector<8x96xf32>
    %cst_60 = arith.constant 1.000000e+00 : f32
    %361 = vector.broadcast %cst_60 : f32 to vector<8x96xf32>
    %362 = arith.addf %361, %360 : vector<8x96xf32>
    %363 = arith.divf %361, %362 : vector<8x96xf32>
    %364 = vector.extract_strided_slice %363 {offsets = [0, 0], sizes = [8, 32], strides = [1, 1]} : vector<8x96xf32> to vector<8x32xf32>
    %365 = vector.extract_strided_slice %363 {offsets = [0, 32], sizes = [8, 32], strides = [1, 1]} : vector<8x96xf32> to vector<8x32xf32>
    %366 = vector.extract_strided_slice %363 {offsets = [0, 64], sizes = [8, 32], strides = [1, 1]} : vector<8x96xf32> to vector<8x32xf32>
    %367 = vector.extract_strided_slice %357 {offsets = [0, 96], sizes = [8, 32], strides = [1, 1]} : vector<8x128xf32> to vector<8x32xf32>
    %368 = math.tanh %367 : vector<8x32xf32>
    %369 = arith.mulf %365, %354 : vector<8x32xf32>
    %370 = arith.mulf %364, %368 : vector<8x32xf32>
    %371 = arith.addf %369, %370 : vector<8x32xf32>
    %372 = math.tanh %371 : vector<8x32xf32>
    %373 = arith.mulf %366, %372 : vector<8x32xf32>
    %c4_i32_61 = arith.constant 4 : i32
    %374 = vector.broadcast %c4_i32_61 : i32 to vector<8x1xi32>
    %375 = arith.cmpi sgt, %0, %374 : vector<8x1xi32>
    %376 = vector.shape_cast %375 : vector<8x1xi1> to vector<8x1xi1>
    %377 = vector.broadcast %376 : vector<8x1xi1> to vector<8x32xi1>
    %378 = arith.select %377, %373, %351 : vector<8x32xi1>, vector<8x32xf32>
    %379 = vector.shape_cast %375 : vector<8x1xi1> to vector<8x1xi1>
    %380 = vector.broadcast %379 : vector<8x1xi1> to vector<8x32xi1>
    %381 = arith.select %380, %371, %354 : vector<8x32xi1>, vector<8x32xf32>
    %382 = vector.extract_strided_slice %244 {offsets = [40, 0], sizes = [8, 128], strides = [1, 1]} : vector<64x128xf32> to vector<8x128xf32>
    %cst_62 = arith.constant dense<0.000000e+00> : vector<8x128xf32>
    %383 = tpu.matmul %378, %239, %cst_62 {dimension_numbers = #tpu.dot_dimension_numbers<[1], [0], [0], [1], [0, 0, 1, 1], [], []>} : vector<8x32xf32>, vector<32x128xf32>, vector<8x128xf32> -> vector<8x128xf32>
    %384 = arith.addf %382, %383 : vector<8x128xf32>
    %385 = vector.extract_strided_slice %384 {offsets = [0, 0], sizes = [8, 96], strides = [1, 1]} : vector<8x128xf32> to vector<8x96xf32>
    %386 = arith.negf %385 : vector<8x96xf32>
    %387 = math.exp %386 : vector<8x96xf32>
    %cst_63 = arith.constant 1.000000e+00 : f32
    %388 = vector.broadcast %cst_63 : f32 to vector<8x96xf32>
    %389 = arith.addf %388, %387 : vector<8x96xf32>
    %390 = arith.divf %388, %389 : vector<8x96xf32>
    %391 = vector.extract_strided_slice %390 {offsets = [0, 0], sizes = [8, 32], strides = [1, 1]} : vector<8x96xf32> to vector<8x32xf32>
    %392 = vector.extract_strided_slice %390 {offsets = [0, 32], sizes = [8, 32], strides = [1, 1]} : vector<8x96xf32> to vector<8x32xf32>
    %393 = vector.extract_strided_slice %390 {offsets = [0, 64], sizes = [8, 32], strides = [1, 1]} : vector<8x96xf32> to vector<8x32xf32>
    %394 = vector.extract_strided_slice %384 {offsets = [0, 96], sizes = [8, 32], strides = [1, 1]} : vector<8x128xf32> to vector<8x32xf32>
    %395 = math.tanh %394 : vector<8x32xf32>
    %396 = arith.mulf %392, %381 : vector<8x32xf32>
    %397 = arith.mulf %391, %395 : vector<8x32xf32>
    %398 = arith.addf %396, %397 : vector<8x32xf32>
    %399 = math.tanh %398 : vector<8x32xf32>
    %400 = arith.mulf %393, %399 : vector<8x32xf32>
    %c5_i32_64 = arith.constant 5 : i32
    %401 = vector.broadcast %c5_i32_64 : i32 to vector<8x1xi32>
    %402 = arith.cmpi sgt, %0, %401 : vector<8x1xi32>
    %403 = vector.shape_cast %402 : vector<8x1xi1> to vector<8x1xi1>
    %404 = vector.broadcast %403 : vector<8x1xi1> to vector<8x32xi1>
    %405 = arith.select %404, %400, %378 : vector<8x32xi1>, vector<8x32xf32>
    %406 = vector.shape_cast %402 : vector<8x1xi1> to vector<8x1xi1>
    %407 = vector.broadcast %406 : vector<8x1xi1> to vector<8x32xi1>
    %408 = arith.select %407, %398, %381 : vector<8x32xi1>, vector<8x32xf32>
    %409 = vector.extract_strided_slice %244 {offsets = [48, 0], sizes = [8, 128], strides = [1, 1]} : vector<64x128xf32> to vector<8x128xf32>
    %cst_65 = arith.constant dense<0.000000e+00> : vector<8x128xf32>
    %410 = tpu.matmul %405, %239, %cst_65 {dimension_numbers = #tpu.dot_dimension_numbers<[1], [0], [0], [1], [0, 0, 1, 1], [], []>} : vector<8x32xf32>, vector<32x128xf32>, vector<8x128xf32> -> vector<8x128xf32>
    %411 = arith.addf %409, %410 : vector<8x128xf32>
    %412 = vector.extract_strided_slice %411 {offsets = [0, 0], sizes = [8, 96], strides = [1, 1]} : vector<8x128xf32> to vector<8x96xf32>
    %413 = arith.negf %412 : vector<8x96xf32>
    %414 = math.exp %413 : vector<8x96xf32>
    %cst_66 = arith.constant 1.000000e+00 : f32
    %415 = vector.broadcast %cst_66 : f32 to vector<8x96xf32>
    %416 = arith.addf %415, %414 : vector<8x96xf32>
    %417 = arith.divf %415, %416 : vector<8x96xf32>
    %418 = vector.extract_strided_slice %417 {offsets = [0, 0], sizes = [8, 32], strides = [1, 1]} : vector<8x96xf32> to vector<8x32xf32>
    %419 = vector.extract_strided_slice %417 {offsets = [0, 32], sizes = [8, 32], strides = [1, 1]} : vector<8x96xf32> to vector<8x32xf32>
    %420 = vector.extract_strided_slice %417 {offsets = [0, 64], sizes = [8, 32], strides = [1, 1]} : vector<8x96xf32> to vector<8x32xf32>
    %421 = vector.extract_strided_slice %411 {offsets = [0, 96], sizes = [8, 32], strides = [1, 1]} : vector<8x128xf32> to vector<8x32xf32>
    %422 = math.tanh %421 : vector<8x32xf32>
    %423 = arith.mulf %419, %408 : vector<8x32xf32>
    %424 = arith.mulf %418, %422 : vector<8x32xf32>
    %425 = arith.addf %423, %424 : vector<8x32xf32>
    %426 = math.tanh %425 : vector<8x32xf32>
    %427 = arith.mulf %420, %426 : vector<8x32xf32>
    %c6_i32_67 = arith.constant 6 : i32
    %428 = vector.broadcast %c6_i32_67 : i32 to vector<8x1xi32>
    %429 = arith.cmpi sgt, %0, %428 : vector<8x1xi32>
    %430 = vector.shape_cast %429 : vector<8x1xi1> to vector<8x1xi1>
    %431 = vector.broadcast %430 : vector<8x1xi1> to vector<8x32xi1>
    %432 = arith.select %431, %427, %405 : vector<8x32xi1>, vector<8x32xf32>
    %433 = vector.shape_cast %429 : vector<8x1xi1> to vector<8x1xi1>
    %434 = vector.broadcast %433 : vector<8x1xi1> to vector<8x32xi1>
    %435 = arith.select %434, %425, %408 : vector<8x32xi1>, vector<8x32xf32>
    %436 = vector.extract_strided_slice %244 {offsets = [56, 0], sizes = [8, 128], strides = [1, 1]} : vector<64x128xf32> to vector<8x128xf32>
    %cst_68 = arith.constant dense<0.000000e+00> : vector<8x128xf32>
    %437 = tpu.matmul %432, %239, %cst_68 {dimension_numbers = #tpu.dot_dimension_numbers<[1], [0], [0], [1], [0, 0, 1, 1], [], []>} : vector<8x32xf32>, vector<32x128xf32>, vector<8x128xf32> -> vector<8x128xf32>
    %438 = arith.addf %436, %437 : vector<8x128xf32>
    %439 = vector.extract_strided_slice %438 {offsets = [0, 0], sizes = [8, 96], strides = [1, 1]} : vector<8x128xf32> to vector<8x96xf32>
    %440 = arith.negf %439 : vector<8x96xf32>
    %441 = math.exp %440 : vector<8x96xf32>
    %cst_69 = arith.constant 1.000000e+00 : f32
    %442 = vector.broadcast %cst_69 : f32 to vector<8x96xf32>
    %443 = arith.addf %442, %441 : vector<8x96xf32>
    %444 = arith.divf %442, %443 : vector<8x96xf32>
    %445 = vector.extract_strided_slice %444 {offsets = [0, 0], sizes = [8, 32], strides = [1, 1]} : vector<8x96xf32> to vector<8x32xf32>
    %446 = vector.extract_strided_slice %444 {offsets = [0, 32], sizes = [8, 32], strides = [1, 1]} : vector<8x96xf32> to vector<8x32xf32>
    %447 = vector.extract_strided_slice %444 {offsets = [0, 64], sizes = [8, 32], strides = [1, 1]} : vector<8x96xf32> to vector<8x32xf32>
    %448 = vector.extract_strided_slice %438 {offsets = [0, 96], sizes = [8, 32], strides = [1, 1]} : vector<8x128xf32> to vector<8x32xf32>
    %449 = math.tanh %448 : vector<8x32xf32>
    %450 = arith.mulf %446, %435 : vector<8x32xf32>
    %451 = arith.mulf %445, %449 : vector<8x32xf32>
    %452 = arith.addf %450, %451 : vector<8x32xf32>
    %453 = math.tanh %452 : vector<8x32xf32>
    %454 = arith.mulf %447, %453 : vector<8x32xf32>
    %c7_i32_70 = arith.constant 7 : i32
    %455 = vector.broadcast %c7_i32_70 : i32 to vector<8x1xi32>
    %456 = arith.cmpi sgt, %0, %455 : vector<8x1xi32>
    %457 = vector.shape_cast %456 : vector<8x1xi1> to vector<8x1xi1>
    %458 = vector.broadcast %457 : vector<8x1xi1> to vector<8x32xi1>
    %459 = arith.select %458, %454, %432 : vector<8x32xi1>, vector<8x32xf32>
    %460 = vector.shape_cast %456 : vector<8x1xi1> to vector<8x1xi1>
    %461 = vector.broadcast %460 : vector<8x1xi1> to vector<8x32xi1>
    %462 = arith.select %461, %452, %435 : vector<8x32xi1>, vector<8x32xf32>
    %c1_71 = arith.constant 1 : index
    %c0_72 = arith.constant 0 : index
    %c0_73 = arith.constant 0 : index
    %463 = vector.load %arg5[%c1_71, %c0_72, %c0_73] : memref<2x8x32xf32, #tpu.memory_space<vmem>>, vector<1x8x32xf32>
    %464 = vector.shape_cast %463 : vector<1x8x32xf32> to vector<8x32xf32>
    %465 = vector.shape_cast %459 : vector<8x32xf32> to vector<1x8x32xf32>
    tpu.vector_store %arg5[%c1_71, %c0_72, %c0_73], %465 {strides = array<i32>} : memref<2x8x32xf32, #tpu.memory_space<vmem>>, vector<1x8x32xf32>,
    %c1_74 = arith.constant 1 : index
    %c0_75 = arith.constant 0 : index
    %c0_76 = arith.constant 0 : index
    %466 = vector.load %arg6[%c1_74, %c0_75, %c0_76] : memref<2x8x32xf32, #tpu.memory_space<vmem>>, vector<1x8x32xf32>
    %467 = vector.shape_cast %466 : vector<1x8x32xf32> to vector<8x32xf32>
    %468 = vector.shape_cast %462 : vector<8x32xf32> to vector<1x8x32xf32>
    tpu.vector_store %arg6[%c1_74, %c0_75, %c0_76], %468 {strides = array<i32>} : memref<2x8x32xf32, #tpu.memory_space<vmem>>, vector<1x8x32xf32>,
    return
  }
}

</mosaic_0001>

<llo_original>
// kernel: tpu_custom_call.1
$region0: #{tpu_custom_call.1}
  #allocation0 [shape = 'u32[]', space=smem, size = 0x4, offset = 0x4, fixed_abs, tag = 'smem constant byte address 0x4 - core index']
  #allocation1 [shape = 'u32[144,128]{1,0:T(1,128)}', space=vmem, size = 0x12000, scoped, tag = 'internal scratch']
  %s0 = inlined_call_operand.vmem [shape: f32[64,32], index: 0, kind: input, shape index: {}]
  %s1 = inlined_call_operand.vmem [shape: s32[8,1], index: 1, kind: input, shape index: {}]
  %s2 = inlined_call_operand.vmem [shape: f32[2,32,128], index: 2, kind: input, shape index: {}]
  %s3 = inlined_call_operand.hbm [shape: f32[2,32,128], index: 3, kind: input, shape index: {}]
  %s4 = inlined_call_operand.vmem [shape: f32[2,1,128], index: 4, kind: input, shape index: {}]
  %s5 = inlined_call_operand.hbm [shape: f32[2,8,32], index: 5, kind: output, shape index: {0}]
  %s6 = inlined_call_operand.hbm [shape: f32[2,8,32], index: 6, kind: output, shape index: {1}]
  %7 = xla_tuple %s5, %s6
  %s8 = sld [smem:[#allocation0]]
  $region42: #{tpu_custom_call.1} parent=0
    _
  %s10 = ssub.s32 1, %s8
  %s11 = scalar_select 0, %s10, %s8
  $region1: #{tpu_custom_call.1} parent=0
    #allocation2 [shape = 'u8[32768]{0}', space=vmem, size = 0x8000, scoped, tag = 'input window, operand 3, single buffered']
    #allocation3 [shape = 's32[1]{0}', space=sflag, size = 0x4, scoped, tag = 'scoped memory for tpu_custom_call.1']
    #allocation4 [shape = 's32[1]{0}', space=sflag, size = 0x4, scoped, tag = 'scoped memory for tpu_custom_call.1']
    #allocation5 [shape = 'u8[8192]{0}', space=vmem, size = 0x2000, scoped, tag = 'output window, operand 0, single buffered']
    #allocation6 [shape = 'u8[8192]{0}', space=vmem, size = 0x2000, scoped, tag = 'output window, operand 1, single buffered']
    #allocation7 [shape = 's32[1]{0}', space=sflag, size = 0x4, scoped, tag = 'scoped memory for tpu_custom_call.1']
    %12 = vsyncpa [#allocation3], 0
    %13 = vsyncpa [#allocation4], 0
    %14 = vsyncpa [#allocation7], 0
    // Predicated region
    $region2: #{tpu_custom_call.1} parent=1 // pred_check
      _
    $region3: #{tpu_custom_call.1} parent=1 // pred_check_branch
      %16 = sbr.rel (0) target = $region5
    $region4: #{tpu_custom_call.1} parent=1 // pred_region
      _
    $region5: #{tpu_custom_call.1} parent=1 // pred_fallthru
      _
    // Predicated region
    $region6: #{tpu_custom_call.1} parent=1 // pred_check
      _
    $region7: #{tpu_custom_call.1} parent=1 // pred_check_branch
      %18 = sbr.rel (0) target = $region9
    $region8: #{tpu_custom_call.1} parent=1 // pred_region
      _
    $region9: #{tpu_custom_call.1} parent=1 // pred_fallthru
      _
    // Predicated region
    $region10: #{tpu_custom_call.1} parent=1 // pred_check
      _
    $region11: #{tpu_custom_call.1} parent=1 // pred_check_branch
      %20 = sbr.rel (0) target = $region13
    $region12: #{tpu_custom_call.1} parent=1 // pred_region
      _
    $region13: #{tpu_custom_call.1} parent=1 // pred_fallthru
      _
    // Predicated region
    $region14: #{tpu_custom_call.1} parent=1 // pred_check
      _
    $region15: #{tpu_custom_call.1} parent=1 // pred_check_branch
      %22 = sbr.rel (0) target = $region17
    $region16: #{tpu_custom_call.1} parent=1 // pred_region
      %s24 = ssub.s32 1024, 1024
      %25 = vsyncadd [#allocation3], %s24
      %s26 = sshll.u32 [#allocation2], 4
      %s27 = int_to_ptr.vmem [resolvable:$true] %s26
      %32 = dma.hbm_to_vmem [thread:$0]  %s3, 1024, %s27, [#allocation3], 128, 128, 8
    $region17: #{tpu_custom_call.1} parent=1 // pred_fallthru
      _
    // Predicated region
    $region18: #{tpu_custom_call.1} parent=1 // pred_check
      _
    $region19: #{tpu_custom_call.1} parent=1 // pred_check_branch
      %34 = sbr.rel (0) target = $region21
    $region20: #{tpu_custom_call.1} parent=1 // pred_region
      _
    $region21: #{tpu_custom_call.1} parent=1 // pred_fallthru
      _
    // Predicated region
    $region22: #{tpu_custom_call.1} parent=1 // pred_check
      _
    $region23: #{tpu_custom_call.1} parent=1 // pred_check_branch
      %36 = sbr.rel (0) target = $region25
    $region24: #{tpu_custom_call.1} parent=1 // pred_region
      %37 = dma.done [#allocation3], 1024
    $region25: #{tpu_custom_call.1} parent=1 // pred_fallthru
      _
    %v38 = vld [vmem:[%s1] sm:$0xff]
    %v39 = vld [vmem:[%s0] sm:$0xff]
    %v40 = vld [vmem:[%s0 + $0x8] sm:$0xff]
    %v41 = vld [vmem:[%s0 + $0x10] sm:$0xff]
    %v42 = vld [vmem:[%s0 + $0x18] sm:$0xff]
    %v43 = vld [vmem:[%s0 + $0x20] sm:$0xff]
    %v44 = vld [vmem:[%s0 + $0x28] sm:$0xff]
    %v45 = vld [vmem:[%s0 + $0x30] sm:$0xff]
    %v46 = vld [vmem:[%s0 + $0x38] sm:$0xff]
    %v47 = vld [vmem:[%s2] sm:$0xff]
    %v48 = vld [vmem:[%s2 + $0x8] sm:$0xff]
    %v49 = vld [vmem:[%s2 + $0x10] sm:$0xff]
    %v50 = vld [vmem:[%s2 + $0x18] sm:$0xff]
    %v51 = vld [vmem:[#allocation2] sm:$0xff]
    %v52 = vld [vmem:[#allocation2 + $0x8] sm:$0xff]
    %v53 = vld [vmem:[#allocation2 + $0x10] sm:$0xff]
    %v54 = vld [vmem:[#allocation2 + $0x18] sm:$0xff]
    %v55 = vld [vmem:[%s4] sm:$0x1]
    %v57 = vlaneseq
    %v58 = vshrl.u32 %v57, 7
    %v59 = vsub.s32 0, %v58
    %v60 = vrot.slane %v55, %v59
    %vm62 = vcmask 261120
    %v64 = vsel %vm62, %v39, 0
    %v67 = vsel %vm62, %v40, 0
    %v70 = vsel %vm62, %v41, 0
    %v73 = vsel %vm62, %v42, 0
    %v76 = vsel %vm62, %v43, 0
    %v79 = vsel %vm62, %v44, 0
    %v82 = vsel %vm62, %v45, 0
    %v85 = vsel %vm62, %v46, 0
    %87 = vmatprep.subr.mxu0 0.0
    %88 = vmatpush1.msra.mxu0 %v47
    %89 = vmatprep.subr.mxu0 0.0
    %90 = vmatpush1.msra.mxu0 %v48
    %91 = vmatprep.subr.mxu0 0.0
    %92 = vmatpush1.msra.mxu0 %v49
    %93 = vmatprep.subr.mxu0 0.0
    %94 = vmatpush1.msra.mxu0 %v50
    %95 = vmatprep.subr.mxu0 0.0
    %96 = vmatpush1.msra.mxu0 0.0
    %97 = vmatprep.subr.mxu0 0.0
    %98 = vmatpush1.msra.mxu0 0.0
    %99 = vmatprep.subr.mxu0 0.0
    %100 = vmatpush1.msra.mxu0 0.0
    %101 = vmatprep.subr.mxu0 0.0
    %102 = vmatpush1.msra.mxu0 0.0
    %103 = vmatprep.subr.mxu0 0.0
    %104 = vmatpush1.msra.mxu0 0.0
    %105 = vmatprep.subr.mxu0 0.0
    %106 = vmatpush1.msra.mxu0 0.0
    %107 = vmatprep.subr.mxu0 0.0
    %108 = vmatpush1.msra.mxu0 0.0
    %109 = vmatprep.subr.mxu0 0.0
    %110 = vmatpush1.msra.mxu0 0.0
    %111 = vmatprep.subr.mxu0 0.0
    %112 = vmatpush1.msra.mxu0 0.0
    %113 = vmatprep.subr.mxu0 0.0
    %114 = vmatpush1.msra.mxu0 0.0
    %115 = vmatprep.subr.mxu0 0.0
    %116 = vmatpush1.msra.mxu0 0.0
    %117 = vmatprep.subr.mxu0 0.0
    %118 = vmatpush1.msra.mxu0 0.0
    %119 = vmatprep.subr.mxu0 0.0
    %120 = vmatpush1.msra.mxu0 0.0
    %121 = vmatprep.subr.mxu0 0.0
    %122 = vmatpush1.msra.mxu0 0.0
    %123 = vmatprep.subr.mxu0 0.0
    %124 = vmatpush1.msra.mxu0 0.0
    %125 = vmatprep.subr.mxu0 0.0
    %126 = vmatpush1.msra.mxu0 0.0
    %127 = vmatprep.subr.mxu0 0.0
    %128 = vmatpush1.msra.mxu0 0.0
    %129 = vmatprep.subr.mxu0 0.0
    %130 = vmatpush1.msra.mxu0 0.0
    %131 = vmatprep.subr.mxu0 0.0
    %132 = vmatpush1.msra.mxu0 0.0
    %133 = vmatprep.subr.mxu0 0.0
    %134 = vmatpush1.msra.mxu0 0.0
    %135 = vmatprep.subr.mxu0 0.0
    %136 = vmatpush1.msra.mxu0 0.0
    %137 = vmatprep.subr.mxu0 0.0
    %138 = vmatpush1.msra.mxu0 0.0
    %139 = vmatprep.subr.mxu0 0.0
    %140 = vmatpush1.msra.mxu0 0.0
    %141 = vmatprep.subr.mxu0 0.0
    %142 = vmatpush1.msra.mxu0 0.0
    %143 = vmatprep.subr.mxu0 0.0
    %144 = vmatpush1.msra.mxu0 0.0
    %145 = vmatprep.subr.mxu0 0.0
    %146 = vmatpush1.msra.mxu0 0.0
    %147 = vmatprep.subr.mxu0 0.0
    %148 = vmatpush1.msra.mxu0 0.0
    %149 = vmatprep.subr.mxu0 0.0
    %150 = vmatpush1.msra.mxu0 0.0
    %151 = vmatprep.mubr.f32.mxu0 0.0
    %152 = vmatmul.mubr.f32.gmra.mrb[0].mxu0 %v64
    %v153 = vpop.f32.mrb[0].mxu0
    %v154 = vadd.f32 %v60, %v153
    %v155 = vpop.f32.mrb[0].mxu0
    %156 = vmatprep.mubr.f32.mxu0 0.0
    %157 = vmatmul.mubr.f32.gmra.mrb[0].mxu0 %v67
    %v158 = vpop.f32.mrb[0].mxu0
    %v159 = vadd.f32 %v60, %v158
    %v160 = vpop.f32.mrb[0].mxu0
    %161 = vmatprep.mubr.f32.mxu0 0.0
    %162 = vmatmul.mubr.f32.gmra.mrb[0].mxu0 %v70
    %v163 = vpop.f32.mrb[0].mxu0
    %v164 = vadd.f32 %v60, %v163
    %v165 = vpop.f32.mrb[0].mxu0
    %166 = vmatprep.mubr.f32.mxu0 0.0
    %167 = vmatmul.mubr.f32.gmra.mrb[0].mxu0 %v73
    %v168 = vpop.f32.mrb[0].mxu0
    %v169 = vadd.f32 %v60, %v168
    %v170 = vpop.f32.mrb[0].mxu0
    %171 = vmatprep.mubr.f32.mxu0 0.0
    %172 = vmatmul.mubr.f32.gmra.mrb[0].mxu0 %v76
    %v173 = vpop.f32.mrb[0].mxu0
    %v174 = vadd.f32 %v60, %v173
    %v175 = vpop.f32.mrb[0].mxu0
    %176 = vmatprep.mubr.f32.mxu0 0.0
    %177 = vmatmul.mubr.f32.gmra.mrb[0].mxu0 %v79
    %v178 = vpop.f32.mrb[0].mxu0
    %v179 = vadd.f32 %v60, %v178
    %v180 = vpop.f32.mrb[0].mxu0
    %181 = vmatprep.mubr.f32.mxu0 0.0
    %182 = vmatmul.mubr.f32.gmra.mrb[0].mxu0 %v82
    %v183 = vpop.f32.mrb[0].mxu0
    %v184 = vadd.f32 %v60, %v183
    %v185 = vpop.f32.mrb[0].mxu0
    %186 = vmatprep.mubr.f32.mxu0 0.0
    %187 = vmatmul.mubr.f32.gmra.mrb[0].mxu0 %v85
    %v188 = vpop.f32.mrb[0].mxu0
    %v189 = vadd.f32 %v60, %v188
    %v190 = vpop.f32.mrb[0].mxu0
    %191 = vdwg.mxu0
    %v193 = vsel %vm62, 0.0, 0
    %195 = vmatprep.subr.mxu0 0.0
    %196 = vmatpush1.msra.mxu0 %v51
    %197 = vmatprep.subr.mxu0 0.0
    %198 = vmatpush1.msra.mxu0 %v52
    %199 = vmatprep.subr.mxu0 0.0
    %200 = vmatpush1.msra.mxu0 %v53
    %201 = vmatprep.subr.mxu0 0.0
    %202 = vmatpush1.msra.mxu0 %v54
    %203 = vmatprep.subr.mxu0 0.0
    %204 = vmatpush1.msra.mxu0 0.0
    %205 = vmatprep.subr.mxu0 0.0
    %206 = vmatpush1.msra.mxu0 0.0
    %207 = vmatprep.subr.mxu0 0.0
    %208 = vmatpush1.msra.mxu0 0.0
    %209 = vmatprep.subr.mxu0 0.0
    %210 = vmatpush1.msra.mxu0 0.0
    %211 = vmatprep.subr.mxu0 0.0
    %212 = vmatpush1.msra.mxu0 0.0
    %213 = vmatprep.subr.mxu0 0.0
    %214 = vmatpush1.msra.mxu0 0.0
    %215 = vmatprep.subr.mxu0 0.0
    %216 = vmatpush1.msra.mxu0 0.0
    %217 = vmatprep.subr.mxu0 0.0
    %218 = vmatpush1.msra.mxu0 0.0
    %219 = vmatprep.subr.mxu0 0.0
    %220 = vmatpush1.msra.mxu0 0.0
    %221 = vmatprep.subr.mxu0 0.0
    %222 = vmatpush1.msra.mxu0 0.0
    %223 = vmatprep.subr.mxu0 0.0
    %224 = vmatpush1.msra.mxu0 0.0
    %225 = vmatprep.subr.mxu0 0.0
    %226 = vmatpush1.msra.mxu0 0.0
    %227 = vmatprep.subr.mxu0 0.0
    %228 = vmatpush1.msra.mxu0 0.0
    %229 = vmatprep.subr.mxu0 0.0
    %230 = vmatpush1.msra.mxu0 0.0
    %231 = vmatprep.subr.mxu0 0.0
    %232 = vmatpush1.msra.mxu0 0.0
    %233 = vmatprep.subr.mxu0 0.0
    %234 = vmatpush1.msra.mxu0 0.0
    %235 = vmatprep.subr.mxu0 0.0
    %236 = vmatpush1.msra.mxu0 0.0
    %237 = vmatprep.subr.mxu0 0.0
    %238 = vmatpush1.msra.mxu0 0.0
    %239 = vmatprep.subr.mxu0 0.0
    %240 = vmatpush1.msra.mxu0 0.0
    %241 = vmatprep.subr.mxu0 0.0
    %242 = vmatpush1.msra.mxu0 0.0
    %243 = vmatprep.subr.mxu0 0.0
    %244 = vmatpush1.msra.mxu0 0.0
    %245 = vmatprep.subr.mxu0 0.0
    %246 = vmatpush1.msra.mxu0 0.0
    %247 = vmatprep.subr.mxu0 0.0
    %248 = vmatpush1.msra.mxu0 0.0
    %249 = vmatprep.subr.mxu0 0.0
    %250 = vmatpush1.msra.mxu0 0.0
    %251 = vmatprep.subr.mxu0 0.0
    %252 = vmatpush1.msra.mxu0 0.0
    %253 = vmatprep.subr.mxu0 0.0
    %254 = vmatpush1.msra.mxu0 0.0
    %255 = vmatprep.subr.mxu0 0.0
    %256 = vmatpush1.msra.mxu0 0.0
    %257 = vmatprep.subr.mxu0 0.0
    %258 = vmatpush1.msra.mxu0 0.0
    %259 = vmatprep.mubr.f32.mxu0 0.0
    %260 = vmatmul.mubr.f32.gmra.mrb[0].mxu0 %v193
    %v261 = vpop.f32.mrb[0].mxu0
    %v262 = vadd.f32 0.0, %v261
    %v263 = vpop.f32.mrb[0].mxu0
    %264 = vdwg.mxu0
    %v265 = vadd.f32 %v154, %v262
    %v266 = vxor.u32 %v265, 2147483648
    %v267 = vmul.f32 %v266, 1.442695
    %v268 = vpow.pop %v267
    %v269 = vadd.f32 %v268, 1.0
    %v270 = vrcp.pop %v269
    %v271 = vmul.f32 1.0, %v270
    %v272 = vtanh.pop %v265
    %v273 = vmul.f32 %v271, 0.0
    %275 = vrot.lane.b32.xlu0 %v272, 32
    %v276 = vpop.permute.xlu0 %275
    %v278 = vmul.f32 %v271, %v276
    %280 = vrot.lane.b32.xlu0 %v278, 32
    %v281 = vpop.permute.xlu0 %280
    %v283 = vadd.f32 %v273, %v281
    %v284 = vtanh.pop %v283
    %286 = vrot.lane.b32.xlu0 %v284, 32
    %v287 = vpop.permute.xlu0 %286
    %v289 = vmul.f32 %v271, %v287
    %vm290 = vcmp.gt.s32.totalorder %v38, 0
    %v291 = vsel %vm290, 1, 0
    %292 = vset.pattern.permute.xlu0 0
    %293 = vperm.xlu0 %292, %v291
    %v294 = vpop.permute.xlu0 %293
    %vm295 = vcmp.eq.s32.totalorder %v294, 1
    %v296 = vsel %vm295, %v289, 0.0
    %v297 = vsel %vm295, %v283, 0.0
    %299 = vrot.lane.b32.xlu0 %v296, 64
    %v300 = vpop.permute.xlu0 %299
    %v301 = vsel %vm62, %v300, 0
    %303 = vmatprep.subr.mxu0 0.0
    %304 = vmatpush1.msra.mxu0 %v51
    %305 = vmatprep.subr.mxu0 0.0
    %306 = vmatpush1.msra.mxu0 %v52
    %307 = vmatprep.subr.mxu0 0.0
    %308 = vmatpush1.msra.mxu0 %v53
    %309 = vmatprep.subr.mxu0 0.0
    %310 = vmatpush1.msra.mxu0 %v54
    %311 = vmatprep.subr.mxu0 0.0
    %312 = vmatpush1.msra.mxu0 0.0
    %313 = vmatprep.subr.mxu0 0.0
    %314 = vmatpush1.msra.mxu0 0.0
    %315 = vmatprep.subr.mxu0 0.0
    %316 = vmatpush1.msra.mxu0 0.0
    %317 = vmatprep.subr.mxu0 0.0
    %318 = vmatpush1.msra.mxu0 0.0
    %319 = vmatprep.subr.mxu0 0.0
    %320 = vmatpush1.msra.mxu0 0.0
    %321 = vmatprep.subr.mxu0 0.0
    %322 = vmatpush1.msra.mxu0 0.0
    %323 = vmatprep.subr.mxu0 0.0
    %324 = vmatpush1.msra.mxu0 0.0
    %325 = vmatprep.subr.mxu0 0.0
    %326 = vmatpush1.msra.mxu0 0.0
    %327 = vmatprep.subr.mxu0 0.0
    %328 = vmatpush1.msra.mxu0 0.0
    %329 = vmatprep.subr.mxu0 0.0
    %330 = vmatpush1.msra.mxu0 0.0
    %331 = vmatprep.subr.mxu0 0.0
    %332 = vmatpush1.msra.mxu0 0.0
    %333 = vmatprep.subr.mxu0 0.0
    %334 = vmatpush1.msra.mxu0 0.0
    %335 = vmatprep.subr.mxu0 0.0
    %336 = vmatpush1.msra.mxu0 0.0
    %337 = vmatprep.subr.mxu0 0.0
    %338 = vmatpush1.msra.mxu0 0.0
    %339 = vmatprep.subr.mxu0 0.0
    %340 = vmatpush1.msra.mxu0 0.0
    %341 = vmatprep.subr.mxu0 0.0
    %342 = vmatpush1.msra.mxu0 0.0
    %343 = vmatprep.subr.mxu0 0.0
    %344 = vmatpush1.msra.mxu0 0.0
    %345 = vmatprep.subr.mxu0 0.0
    %346 = vmatpush1.msra.mxu0 0.0
    %347 = vmatprep.subr.mxu0 0.0
    %348 = vmatpush1.msra.mxu0 0.0
    %349 = vmatprep.subr.mxu0 0.0
    %350 = vmatpush1.msra.mxu0 0.0
    %351 = vmatprep.subr.mxu0 0.0
    %352 = vmatpush1.msra.mxu0 0.0
    %353 = vmatprep.subr.mxu0 0.0
    %354 = vmatpush1.msra.mxu0 0.0
    %355 = vmatprep.subr.mxu0 0.0
    %356 = vmatpush1.msra.mxu0 0.0
    %357 = vmatprep.subr.mxu0 0.0
    %358 = vmatpush1.msra.mxu0 0.0
    %359 = vmatprep.subr.mxu0 0.0
    %360 = vmatpush1.msra.mxu0 0.0
    %361 = vmatprep.subr.mxu0 0.0
    %362 = vmatpush1.msra.mxu0 0.0
    %363 = vmatprep.subr.mxu0 0.0
    %364 = vmatpush1.msra.mxu0 0.0
    %365 = vmatprep.subr.mxu0 0.0
    %366 = vmatpush1.msra.mxu0 0.0
    %367 = vmatprep.mubr.f32.mxu0 0.0
    %368 = vmatmul.mubr.f32.gmra.mrb[0].mxu0 %v301
    %v369 = vpop.f32.mrb[0].mxu0
    %v370 = vadd.f32 0.0, %v369
    %v371 = vpop.f32.mrb[0].mxu0
    %372 = vdwg.mxu0
    %v373 = vadd.f32 %v159, %v370
    %v374 = vxor.u32 %v373, 2147483648
    %v375 = vmul.f32 %v374, 1.442695
    %v376 = vpow.pop %v375
    %v377 = vadd.f32 %v376, 1.0
    %v378 = vrcp.pop %v377
    %v379 = vmul.f32 1.0, %v378
    %v380 = vtanh.pop %v373
    %v381 = vmul.f32 %v379, %v297
    %383 = vrot.lane.b32.xlu0 %v380, 32
    %v384 = vpop.permute.xlu0 %383
    %v386 = vmul.f32 %v379, %v384
    %388 = vrot.lane.b32.xlu0 %v386, 32
    %v389 = vpop.permute.xlu0 %388
    %v391 = vadd.f32 %v381, %v389
    %v392 = vtanh.pop %v391
    %394 = vrot.lane.b32.xlu0 %v392, 32
    %v395 = vpop.permute.xlu0 %394
    %v397 = vmul.f32 %v379, %v395
    %vm398 = vcmp.gt.s32.totalorder %v38, 1
    %v399 = vsel %vm398, 1, 0
    %400 = vset.pattern.permute.xlu0 0
    %401 = vperm.xlu0 %400, %v399
    %v402 = vpop.permute.xlu0 %401
    %vm403 = vcmp.eq.s32.totalorder %v402, 1
    %v404 = vsel %vm403, %v397, %v296
    %v405 = vsel %vm403, %v391, %v297
    %407 = vrot.lane.b32.xlu0 %v404, 64
    %v408 = vpop.permute.xlu0 %407
    %v409 = vsel %vm62, %v408, 0
    %411 = vmatprep.subr.mxu0 0.0
    %412 = vmatpush1.msra.mxu0 %v51
    %413 = vmatprep.subr.mxu0 0.0
    %414 = vmatpush1.msra.mxu0 %v52
    %415 = vmatprep.subr.mxu0 0.0
    %416 = vmatpush1.msra.mxu0 %v53
    %417 = vmatprep.subr.mxu0 0.0
    %418 = vmatpush1.msra.mxu0 %v54
    %419 = vmatprep.subr.mxu0 0.0
    %420 = vmatpush1.msra.mxu0 0.0
    %421 = vmatprep.subr.mxu0 0.0
    %422 = vmatpush1.msra.mxu0 0.0
    %423 = vmatprep.subr.mxu0 0.0
    %424 = vmatpush1.msra.mxu0 0.0
    %425 = vmatprep.subr.mxu0 0.0
    %426 = vmatpush1.msra.mxu0 0.0
    %427 = vmatprep.subr.mxu0 0.0
    %428 = vmatpush1.msra.mxu0 0.0
    %429 = vmatprep.subr.mxu0 0.0
    %430 = vmatpush1.msra.mxu0 0.0
    %431 = vmatprep.subr.mxu0 0.0
    %432 = vmatpush1.msra.mxu0 0.0
    %433 = vmatprep.subr.mxu0 0.0
    %434 = vmatpush1.msra.mxu0 0.0
    %435 = vmatprep.subr.mxu0 0.0
    %436 = vmatpush1.msra.mxu0 0.0
    %437 = vmatprep.subr.mxu0 0.0
    %438 = vmatpush1.msra.mxu0 0.0
    %439 = vmatprep.subr.mxu0 0.0
    %440 = vmatpush1.msra.mxu0 0.0
    %441 = vmatprep.subr.mxu0 0.0
    %442 = vmatpush1.msra.mxu0 0.0
    %443 = vmatprep.subr.mxu0 0.0
    %444 = vmatpush1.msra.mxu0 0.0
    %445 = vmatprep.subr.mxu0 0.0
    %446 = vmatpush1.msra.mxu0 0.0
    %447 = vmatprep.subr.mxu0 0.0
    %448 = vmatpush1.msra.mxu0 0.0
    %449 = vmatprep.subr.mxu0 0.0
    %450 = vmatpush1.msra.mxu0 0.0
    %451 = vmatprep.subr.mxu0 0.0
    %452 = vmatpush1.msra.mxu0 0.0
    %453 = vmatprep.subr.mxu0 0.0
    %454 = vmatpush1.msra.mxu0 0.0
    %455 = vmatprep.subr.mxu0 0.0
    %456 = vmatpush1.msra.mxu0 0.0
    %457 = vmatprep.subr.mxu0 0.0
    %458 = vmatpush1.msra.mxu0 0.0
    %459 = vmatprep.subr.mxu0 0.0
    %460 = vmatpush1.msra.mxu0 0.0
    %461 = vmatprep.subr.mxu0 0.0
    %462 = vmatpush1.msra.mxu0 0.0
    %463 = vmatprep.subr.mxu0 0.0
    %464 = vmatpush1.msra.mxu0 0.0
    %465 = vmatprep.subr.mxu0 0.0
    %466 = vmatpush1.msra.mxu0 0.0
    %467 = vmatprep.subr.mxu0 0.0
    %468 = vmatpush1.msra.mxu0 0.0
    %469 = vmatprep.subr.mxu0 0.0
    %470 = vmatpush1.msra.mxu0 0.0
    %471 = vmatprep.subr.mxu0 0.0
    %472 = vmatpush1.msra.mxu0 0.0
    %473 = vmatprep.subr.mxu0 0.0
    %474 = vmatpush1.msra.mxu0 0.0
    %475 = vmatprep.mubr.f32.mxu0 0.0
    %476 = vmatmul.mubr.f32.gmra.mrb[0].mxu0 %v409
    %v477 = vpop.f32.mrb[0].mxu0
    %v478 = vadd.f32 0.0, %v477
    %v479 = vpop.f32.mrb[0].mxu0
    %480 = vdwg.mxu0
    %v481 = vadd.f32 %v164, %v478
    %v482 = vxor.u32 %v481, 2147483648
    %v483 = vmul.f32 %v482, 1.442695
    %v484 = vpow.pop %v483
    %v485 = vadd.f32 %v484, 1.0
    %v486 = vrcp.pop %v485
    %v487 = vmul.f32 1.0, %v486
    %v488 = vtanh.pop %v481
    %v489 = vmul.f32 %v487, %v405
    %491 = vrot.lane.b32.xlu0 %v488, 32
    %v492 = vpop.permute.xlu0 %491
    %v494 = vmul.f32 %v487, %v492
    %496 = vrot.lane.b32.xlu0 %v494, 32
    %v497 = vpop.permute.xlu0 %496
    %v499 = vadd.f32 %v489, %v497
    %v500 = vtanh.pop %v499
    %502 = vrot.lane.b32.xlu0 %v500, 32
    %v503 = vpop.permute.xlu0 %502
    %v505 = vmul.f32 %v487, %v503
    %vm506 = vcmp.gt.s32.totalorder %v38, 2
    %v507 = vsel %vm506, 1, 0
    %508 = vset.pattern.permute.xlu0 0
    %509 = vperm.xlu0 %508, %v507
    %v510 = vpop.permute.xlu0 %509
    %vm511 = vcmp.eq.s32.totalorder %v510, 1
    %v512 = vsel %vm511, %v505, %v404
    %v513 = vsel %vm511, %v499, %v405
    %515 = vrot.lane.b32.xlu0 %v512, 64
    %v516 = vpop.permute.xlu0 %515
    %v517 = vsel %vm62, %v516, 0
    %519 = vmatprep.subr.mxu0 0.0
    %520 = vmatpush1.msra.mxu0 %v51
    %521 = vmatprep.subr.mxu0 0.0
    %522 = vmatpush1.msra.mxu0 %v52
    %523 = vmatprep.subr.mxu0 0.0
    %524 = vmatpush1.msra.mxu0 %v53
    %525 = vmatprep.subr.mxu0 0.0
    %526 = vmatpush1.msra.mxu0 %v54
    %527 = vmatprep.subr.mxu0 0.0
    %528 = vmatpush1.msra.mxu0 0.0
    %529 = vmatprep.subr.mxu0 0.0
    %530 = vmatpush1.msra.mxu0 0.0
    %531 = vmatprep.subr.mxu0 0.0
    %532 = vmatpush1.msra.mxu0 0.0
    %533 = vmatprep.subr.mxu0 0.0
    %534 = vmatpush1.msra.mxu0 0.0
    %535 = vmatprep.subr.mxu0 0.0
    %536 = vmatpush1.msra.mxu0 0.0
    %537 = vmatprep.subr.mxu0 0.0
    %538 = vmatpush1.msra.mxu0 0.0
    %539 = vmatprep.subr.mxu0 0.0
    %540 = vmatpush1.msra.mxu0 0.0
    %541 = vmatprep.subr.mxu0 0.0
    %542 = vmatpush1.msra.mxu0 0.0
    %543 = vmatprep.subr.mxu0 0.0
    %544 = vmatpush1.msra.mxu0 0.0
    %545 = vmatprep.subr.mxu0 0.0
    %546 = vmatpush1.msra.mxu0 0.0
    %547 = vmatprep.subr.mxu0 0.0
    %548 = vmatpush1.msra.mxu0 0.0
    %549 = vmatprep.subr.mxu0 0.0
    %550 = vmatpush1.msra.mxu0 0.0
    %551 = vmatprep.subr.mxu0 0.0
    %552 = vmatpush1.msra.mxu0 0.0
    %553 = vmatprep.subr.mxu0 0.0
    %554 = vmatpush1.msra.mxu0 0.0
    %555 = vmatprep.subr.mxu0 0.0
    %556 = vmatpush1.msra.mxu0 0.0
    %557 = vmatprep.subr.mxu0 0.0
    %558 = vmatpush1.msra.mxu0 0.0
    %559 = vmatprep.subr.mxu0 0.0
    %560 = vmatpush1.msra.mxu0 0.0
    %561 = vmatprep.subr.mxu0 0.0
    %562 = vmatpush1.msra.mxu0 0.0
    %563 = vmatprep.subr.mxu0 0.0
    %564 = vmatpush1.msra.mxu0 0.0
    %565 = vmatprep.subr.mxu0 0.0
    %566 = vmatpush1.msra.mxu0 0.0
    %567 = vmatprep.subr.mxu0 0.0
    %568 = vmatpush1.msra.mxu0 0.0
    %569 = vmatprep.subr.mxu0 0.0
    %570 = vmatpush1.msra.mxu0 0.0
    %571 = vmatprep.subr.mxu0 0.0
    %572 = vmatpush1.msra.mxu0 0.0
    %573 = vmatprep.subr.mxu0 0.0
    %574 = vmatpush1.msra.mxu0 0.0
    %575 = vmatprep.subr.mxu0 0.0
    %576 = vmatpush1.msra.mxu0 0.0
    %577 = vmatprep.subr.mxu0 0.0
    %578 = vmatpush1.msra.mxu0 0.0
    %579 = vmatprep.subr.mxu0 0.0
    %580 = vmatpush1.msra.mxu0 0.0
    %581 = vmatprep.subr.mxu0 0.0
    %582 = vmatpush1.msra.mxu0 0.0
    %583 = vmatprep.mubr.f32.mxu0 0.0
    %584 = vmatmul.mubr.f32.gmra.mrb[0].mxu0 %v517
    %v585 = vpop.f32.mrb[0].mxu0
    %v586 = vadd.f32 0.0, %v585
    %v587 = vpop.f32.mrb[0].mxu0
    %588 = vdwg.mxu0
    %v589 = vadd.f32 %v169, %v586
    %v590 = vxor.u32 %v589, 2147483648
    %v591 = vmul.f32 %v590, 1.442695
    %v592 = vpow.pop %v591
    %v593 = vadd.f32 %v592, 1.0
    %v594 = vrcp.pop %v593
    %v595 = vmul.f32 1.0, %v594
    %v596 = vtanh.pop %v589
    %v597 = vmul.f32 %v595, %v513
    %599 = vrot.lane.b32.xlu0 %v596, 32
    %v600 = vpop.permute.xlu0 %599
    %v602 = vmul.f32 %v595, %v600
    %604 = vrot.lane.b32.xlu0 %v602, 32
    %v605 = vpop.permute.xlu0 %604
    %v607 = vadd.f32 %v597, %v605
    %v608 = vtanh.pop %v607
    %610 = vrot.lane.b32.xlu0 %v608, 32
    %v611 = vpop.permute.xlu0 %610
    %v613 = vmul.f32 %v595, %v611
    %vm614 = vcmp.gt.s32.totalorder %v38, 3
    %v615 = vsel %vm614, 1, 0
    %616 = vset.pattern.permute.xlu0 0
    %617 = vperm.xlu0 %616, %v615
    %v618 = vpop.permute.xlu0 %617
    %vm619 = vcmp.eq.s32.totalorder %v618, 1
    %v620 = vsel %vm619, %v613, %v512
    %v621 = vsel %vm619, %v607, %v513
    %623 = vrot.lane.b32.xlu0 %v620, 64
    %v624 = vpop.permute.xlu0 %623
    %v625 = vsel %vm62, %v624, 0
    %627 = vmatprep.subr.mxu0 0.0
    %628 = vmatpush1.msra.mxu0 %v51
    %629 = vmatprep.subr.mxu0 0.0
    %630 = vmatpush1.msra.mxu0 %v52
    %631 = vmatprep.subr.mxu0 0.0
    %632 = vmatpush1.msra.mxu0 %v53
    %633 = vmatprep.subr.mxu0 0.0
    %634 = vmatpush1.msra.mxu0 %v54
    %635 = vmatprep.subr.mxu0 0.0
    %636 = vmatpush1.msra.mxu0 0.0
    %637 = vmatprep.subr.mxu0 0.0
    %638 = vmatpush1.msra.mxu0 0.0
    %639 = vmatprep.subr.mxu0 0.0
    %640 = vmatpush1.msra.mxu0 0.0
    %641 = vmatprep.subr.mxu0 0.0
    %642 = vmatpush1.msra.mxu0 0.0
    %643 = vmatprep.subr.mxu0 0.0
    %644 = vmatpush1.msra.mxu0 0.0
    %645 = vmatprep.subr.mxu0 0.0
    %646 = vmatpush1.msra.mxu0 0.0
    %647 = vmatprep.subr.mxu0 0.0
    %648 = vmatpush1.msra.mxu0 0.0
    %649 = vmatprep.subr.mxu0 0.0
    %650 = vmatpush1.msra.mxu0 0.0
    %651 = vmatprep.subr.mxu0 0.0
    %652 = vmatpush1.msra.mxu0 0.0
    %653 = vmatprep.subr.mxu0 0.0
    %654 = vmatpush1.msra.mxu0 0.0
    %655 = vmatprep.subr.mxu0 0.0
    %656 = vmatpush1.msra.mxu0 0.0
    %657 = vmatprep.subr.mxu0 0.0
    %658 = vmatpush1.msra.mxu0 0.0
    %659 = vmatprep.subr.mxu0 0.0
    %660 = vmatpush1.msra.mxu0 0.0
    %661 = vmatprep.subr.mxu0 0.0
    %662 = vmatpush1.msra.mxu0 0.0
    %663 = vmatprep.subr.mxu0 0.0
    %664 = vmatpush1.msra.mxu0 0.0
    %665 = vmatprep.subr.mxu0 0.0
    %666 = vmatpush1.msra.mxu0 0.0
    %667 = vmatprep.subr.mxu0 0.0
    %668 = vmatpush1.msra.mxu0 0.0
    %669 = vmatprep.subr.mxu0 0.0
    %670 = vmatpush1.msra.mxu0 0.0
    %671 = vmatprep.subr.mxu0 0.0
    %672 = vmatpush1.msra.mxu0 0.0
    %673 = vmatprep.subr.mxu0 0.0
    %674 = vmatpush1.msra.mxu0 0.0
    %675 = vmatprep.subr.mxu0 0.0
    %676 = vmatpush1.msra.mxu0 0.0
    %677 = vmatprep.subr.mxu0 0.0
    %678 = vmatpush1.msra.mxu0 0.0
    %679 = vmatprep.subr.mxu0 0.0
    %680 = vmatpush1.msra.mxu0 0.0
    %681 = vmatprep.subr.mxu0 0.0
    %682 = vmatpush1.msra.mxu0 0.0
    %683 = vmatprep.subr.mxu0 0.0
    %684 = vmatpush1.msra.mxu0 0.0
    %685 = vmatprep.subr.mxu0 0.0
    %686 = vmatpush1.msra.mxu0 0.0
    %687 = vmatprep.subr.mxu0 0.0
    %688 = vmatpush1.msra.mxu0 0.0
    %689 = vmatprep.subr.mxu0 0.0
    %690 = vmatpush1.msra.mxu0 0.0
    %691 = vmatprep.mubr.f32.mxu0 0.0
    %692 = vmatmul.mubr.f32.gmra.mrb[0].mxu0 %v625
    %v693 = vpop.f32.mrb[0].mxu0
    %v694 = vadd.f32 0.0, %v693
    %v695 = vpop.f32.mrb[0].mxu0
    %696 = vdwg.mxu0
    %v697 = vadd.f32 %v174, %v694
    %v698 = vxor.u32 %v697, 2147483648
    %v699 = vmul.f32 %v698, 1.442695
    %v700 = vpow.pop %v699
    %v701 = vadd.f32 %v700, 1.0
    %v702 = vrcp.pop %v701
    %v703 = vmul.f32 1.0, %v702
    %v704 = vtanh.pop %v697
    %v705 = vmul.f32 %v703, %v621
    %707 = vrot.lane.b32.xlu0 %v704, 32
    %v708 = vpop.permute.xlu0 %707
    %v710 = vmul.f32 %v703, %v708
    %712 = vrot.lane.b32.xlu0 %v710, 32
    %v713 = vpop.permute.xlu0 %712
    %v715 = vadd.f32 %v705, %v713
    %v716 = vtanh.pop %v715
    %718 = vrot.lane.b32.xlu0 %v716, 32
    %v719 = vpop.permute.xlu0 %718
    %v721 = vmul.f32 %v703, %v719
    %vm722 = vcmp.gt.s32.totalorder %v38, 4
    %v723 = vsel %vm722, 1, 0
    %724 = vset.pattern.permute.xlu0 0
    %725 = vperm.xlu0 %724, %v723
    %v726 = vpop.permute.xlu0 %725
    %vm727 = vcmp.eq.s32.totalorder %v726, 1
    %v728 = vsel %vm727, %v721, %v620
    %v729 = vsel %vm727, %v715, %v621
    %731 = vrot.lane.b32.xlu0 %v728, 64
    %v732 = vpop.permute.xlu0 %731
    %v733 = vsel %vm62, %v732, 0
    %735 = vmatprep.subr.mxu0 0.0
    %736 = vmatpush1.msra.mxu0 %v51
    %737 = vmatprep.subr.mxu0 0.0
    %738 = vmatpush1.msra.mxu0 %v52
    %739 = vmatprep.subr.mxu0 0.0
    %740 = vmatpush1.msra.mxu0 %v53
    %741 = vmatprep.subr.mxu0 0.0
    %742 = vmatpush1.msra.mxu0 %v54
    %743 = vmatprep.subr.mxu0 0.0
    %744 = vmatpush1.msra.mxu0 0.0
    %745 = vmatprep.subr.mxu0 0.0
    %746 = vmatpush1.msra.mxu0 0.0
    %747 = vmatprep.subr.mxu0 0.0
    %748 = vmatpush1.msra.mxu0 0.0
    %749 = vmatprep.subr.mxu0 0.0
    %750 = vmatpush1.msra.mxu0 0.0
    %751 = vmatprep.subr.mxu0 0.0
    %752 = vmatpush1.msra.mxu0 0.0
    %753 = vmatprep.subr.mxu0 0.0
    %754 = vmatpush1.msra.mxu0 0.0
    %755 = vmatprep.subr.mxu0 0.0
    %756 = vmatpush1.msra.mxu0 0.0
    %757 = vmatprep.subr.mxu0 0.0
    %758 = vmatpush1.msra.mxu0 0.0
    %759 = vmatprep.subr.mxu0 0.0
    %760 = vmatpush1.msra.mxu0 0.0
    %761 = vmatprep.subr.mxu0 0.0
    %762 = vmatpush1.msra.mxu0 0.0
    %763 = vmatprep.subr.mxu0 0.0
    %764 = vmatpush1.msra.mxu0 0.0
    %765 = vmatprep.subr.mxu0 0.0
    %766 = vmatpush1.msra.mxu0 0.0
    %767 = vmatprep.subr.mxu0 0.0
    %768 = vmatpush1.msra.mxu0 0.0
    %769 = vmatprep.subr.mxu0 0.0
    %770 = vmatpush1.msra.mxu0 0.0
    %771 = vmatprep.subr.mxu0 0.0
    %772 = vmatpush1.msra.mxu0 0.0
    %773 = vmatprep.subr.mxu0 0.0
    %774 = vmatpush1.msra.mxu0 0.0
    %775 = vmatprep.subr.mxu0 0.0
    %776 = vmatpush1.msra.mxu0 0.0
    %777 = vmatprep.subr.mxu0 0.0
    %778 = vmatpush1.msra.mxu0 0.0
    %779 = vmatprep.subr.mxu0 0.0
    %780 = vmatpush1.msra.mxu0 0.0
    %781 = vmatprep.subr.mxu0 0.0
    %782 = vmatpush1.msra.mxu0 0.0
    %783 = vmatprep.subr.mxu0 0.0
    %784 = vmatpush1.msra.mxu0 0.0
    %785 = vmatprep.subr.mxu0 0.0
    %786 = vmatpush1.msra.mxu0 0.0
    %787 = vmatprep.subr.mxu0 0.0
    %788 = vmatpush1.msra.mxu0 0.0
    %789 = vmatprep.subr.mxu0 0.0
    %790 = vmatpush1.msra.mxu0 0.0
    %791 = vmatprep.subr.mxu0 0.0
    %792 = vmatpush1.msra.mxu0 0.0
    %793 = vmatprep.subr.mxu0 0.0
    %794 = vmatpush1.msra.mxu0 0.0
    %795 = vmatprep.subr.mxu0 0.0
    %796 = vmatpush1.msra.mxu0 0.0
    %797 = vmatprep.subr.mxu0 0.0
    %798 = vmatpush1.msra.mxu0 0.0
    %799 = vmatprep.mubr.f32.mxu0 0.0
    %800 = vmatmul.mubr.f32.gmra.mrb[0].mxu0 %v733
    %v801 = vpop.f32.mrb[0].mxu0
    %v802 = vadd.f32 0.0, %v801
    %v803 = vpop.f32.mrb[0].mxu0
    %804 = vdwg.mxu0
    %v805 = vadd.f32 %v179, %v802
    %v806 = vxor.u32 %v805, 2147483648
    %v807 = vmul.f32 %v806, 1.442695
    %v808 = vpow.pop %v807
    %v809 = vadd.f32 %v808, 1.0
    %v810 = vrcp.pop %v809
    %v811 = vmul.f32 1.0, %v810
    %v812 = vtanh.pop %v805
    %v813 = vmul.f32 %v811, %v729
    %815 = vrot.lane.b32.xlu0 %v812, 32
    %v816 = vpop.permute.xlu0 %815
    %v818 = vmul.f32 %v811, %v816
    %820 = vrot.lane.b32.xlu0 %v818, 32
    %v821 = vpop.permute.xlu0 %820
    %v823 = vadd.f32 %v813, %v821
    %v824 = vtanh.pop %v823
    %826 = vrot.lane.b32.xlu0 %v824, 32
    %v827 = vpop.permute.xlu0 %826
    %v829 = vmul.f32 %v811, %v827
    %vm830 = vcmp.gt.s32.totalorder %v38, 5
    %v831 = vsel %vm830, 1, 0
    %832 = vset.pattern.permute.xlu0 0
    %833 = vperm.xlu0 %832, %v831
    %v834 = vpop.permute.xlu0 %833
    %vm835 = vcmp.eq.s32.totalorder %v834, 1
    %v836 = vsel %vm835, %v829, %v728
    %v837 = vsel %vm835, %v823, %v729
    %839 = vrot.lane.b32.xlu0 %v836, 64
    %v840 = vpop.permute.xlu0 %839
    %v841 = vsel %vm62, %v840, 0
    %843 = vmatprep.subr.mxu0 0.0
    %844 = vmatpush1.msra.mxu0 %v51
    %845 = vmatprep.subr.mxu0 0.0
    %846 = vmatpush1.msra.mxu0 %v52
    %847 = vmatprep.subr.mxu0 0.0
    %848 = vmatpush1.msra.mxu0 %v53
    %849 = vmatprep.subr.mxu0 0.0
    %850 = vmatpush1.msra.mxu0 %v54
    %851 = vmatprep.subr.mxu0 0.0
    %852 = vmatpush1.msra.mxu0 0.0
    %853 = vmatprep.subr.mxu0 0.0
    %854 = vmatpush1.msra.mxu0 0.0
    %855 = vmatprep.subr.mxu0 0.0
    %856 = vmatpush1.msra.mxu0 0.0
    %857 = vmatprep.subr.mxu0 0.0
    %858 = vmatpush1.msra.mxu0 0.0
    %859 = vmatprep.subr.mxu0 0.0
    %860 = vmatpush1.msra.mxu0 0.0
    %861 = vmatprep.subr.mxu0 0.0
    %862 = vmatpush1.msra.mxu0 0.0
    %863 = vmatprep.subr.mxu0 0.0
    %864 = vmatpush1.msra.mxu0 0.0
    %865 = vmatprep.subr.mxu0 0.0
    %866 = vmatpush1.msra.mxu0 0.0
    %867 = vmatprep.subr.mxu0 0.0
    %868 = vmatpush1.msra.mxu0 0.0
    %869 = vmatprep.subr.mxu0 0.0
    %870 = vmatpush1.msra.mxu0 0.0
    %871 = vmatprep.subr.mxu0 0.0
    %872 = vmatpush1.msra.mxu0 0.0
    %873 = vmatprep.subr.mxu0 0.0
    %874 = vmatpush1.msra.mxu0 0.0
    %875 = vmatprep.subr.mxu0 0.0
    %876 = vmatpush1.msra.mxu0 0.0
    %877 = vmatprep.subr.mxu0 0.0
    %878 = vmatpush1.msra.mxu0 0.0
    %879 = vmatprep.subr.mxu0 0.0
    %880 = vmatpush1.msra.mxu0 0.0
    %881 = vmatprep.subr.mxu0 0.0
    %882 = vmatpush1.msra.mxu0 0.0
    %883 = vmatprep.subr.mxu0 0.0
    %884 = vmatpush1.msra.mxu0 0.0
    %885 = vmatprep.subr.mxu0 0.0
    %886 = vmatpush1.msra.mxu0 0.0
    %887 = vmatprep.subr.mxu0 0.0
    %888 = vmatpush1.msra.mxu0 0.0
    %889 = vmatprep.subr.mxu0 0.0
    %890 = vmatpush1.msra.mxu0 0.0
    %891 = vmatprep.subr.mxu0 0.0
    %892 = vmatpush1.msra.mxu0 0.0
    %893 = vmatprep.subr.mxu0 0.0
    %894 = vmatpush1.msra.mxu0 0.0
    %895 = vmatprep.subr.mxu0 0.0
    %896 = vmatpush1.msra.mxu0 0.0
    %897 = vmatprep.subr.mxu0 0.0
    %898 = vmatpush1.msra.mxu0 0.0
    %899 = vmatprep.subr.mxu0 0.0
    %900 = vmatpush1.msra.mxu0 0.0
    %901 = vmatprep.subr.mxu0 0.0
    %902 = vmatpush1.msra.mxu0 0.0
    %903 = vmatprep.subr.mxu0 0.0
    %904 = vmatpush1.msra.mxu0 0.0
    %905 = vmatprep.subr.mxu0 0.0
    %906 = vmatpush1.msra.mxu0 0.0
    %907 = vmatprep.mubr.f32.mxu0 0.0
    %908 = vmatmul.mubr.f32.gmra.mrb[0].mxu0 %v841
    %v909 = vpop.f32.mrb[0].mxu0
    %v910 = vadd.f32 0.0, %v909
    %v911 = vpop.f32.mrb[0].mxu0
    %912 = vdwg.mxu0
    %v913 = vadd.f32 %v184, %v910
    %v914 = vxor.u32 %v913, 2147483648
    %v915 = vmul.f32 %v914, 1.442695
    %v916 = vpow.pop %v915
    %v917 = vadd.f32 %v916, 1.0
    %v918 = vrcp.pop %v917
    %v919 = vmul.f32 1.0, %v918
    %v920 = vtanh.pop %v913
    %v921 = vmul.f32 %v919, %v837
    %923 = vrot.lane.b32.xlu0 %v920, 32
    %v924 = vpop.permute.xlu0 %923
    %v926 = vmul.f32 %v919, %v924
    %928 = vrot.lane.b32.xlu0 %v926, 32
    %v929 = vpop.permute.xlu0 %928
    %v931 = vadd.f32 %v921, %v929
    %v932 = vtanh.pop %v931
    %934 = vrot.lane.b32.xlu0 %v932, 32
    %v935 = vpop.permute.xlu0 %934
    %v937 = vmul.f32 %v919, %v935
    %vm938 = vcmp.gt.s32.totalorder %v38, 6
    %v939 = vsel %vm938, 1, 0
    %940 = vset.pattern.permute.xlu0 0
    %941 = vperm.xlu0 %940, %v939
    %v942 = vpop.permute.xlu0 %941
    %vm943 = vcmp.eq.s32.totalorder %v942, 1
    %v944 = vsel %vm943, %v937, %v836
    %v945 = vsel %vm943, %v931, %v837
    %947 = vrot.lane.b32.xlu0 %v944, 64
    %v948 = vpop.permute.xlu0 %947
    %v949 = vsel %vm62, %v948, 0
    %951 = vmatprep.subr.mxu0 0.0
    %952 = vmatpush1.msra.mxu0 %v51
    %953 = vmatprep.subr.mxu0 0.0
    %954 = vmatpush1.msra.mxu0 %v52
    %955 = vmatprep.subr.mxu0 0.0
    %956 = vmatpush1.msra.mxu0 %v53
    %957 = vmatprep.subr.mxu0 0.0
    %958 = vmatpush1.msra.mxu0 %v54
    %959 = vmatprep.subr.mxu0 0.0
    %960 = vmatpush1.msra.mxu0 0.0
    %961 = vmatprep.subr.mxu0 0.0
    %962 = vmatpush1.msra.mxu0 0.0
    %963 = vmatprep.subr.mxu0 0.0
    %964 = vmatpush1.msra.mxu0 0.0
    %965 = vmatprep.subr.mxu0 0.0
    %966 = vmatpush1.msra.mxu0 0.0
    %967 = vmatprep.subr.mxu0 0.0
    %968 = vmatpush1.msra.mxu0 0.0
    %969 = vmatprep.subr.mxu0 0.0
    %970 = vmatpush1.msra.mxu0 0.0
    %971 = vmatprep.subr.mxu0 0.0
    %972 = vmatpush1.msra.mxu0 0.0
    %973 = vmatprep.subr.mxu0 0.0
    %974 = vmatpush1.msra.mxu0 0.0
    %975 = vmatprep.subr.mxu0 0.0
    %976 = vmatpush1.msra.mxu0 0.0
    %977 = vmatprep.subr.mxu0 0.0
    %978 = vmatpush1.msra.mxu0 0.0
    %979 = vmatprep.subr.mxu0 0.0
    %980 = vmatpush1.msra.mxu0 0.0
    %981 = vmatprep.subr.mxu0 0.0
    %982 = vmatpush1.msra.mxu0 0.0
    %983 = vmatprep.subr.mxu0 0.0
    %984 = vmatpush1.msra.mxu0 0.0
    %985 = vmatprep.subr.mxu0 0.0
    %986 = vmatpush1.msra.mxu0 0.0
    %987 = vmatprep.subr.mxu0 0.0
    %988 = vmatpush1.msra.mxu0 0.0
    %989 = vmatprep.subr.mxu0 0.0
    %990 = vmatpush1.msra.mxu0 0.0
    %991 = vmatprep.subr.mxu0 0.0
    %992 = vmatpush1.msra.mxu0 0.0
    %993 = vmatprep.subr.mxu0 0.0
    %994 = vmatpush1.msra.mxu0 0.0
    %995 = vmatprep.subr.mxu0 0.0
    %996 = vmatpush1.msra.mxu0 0.0
    %997 = vmatprep.subr.mxu0 0.0
    %998 = vmatpush1.msra.mxu0 0.0
    %999 = vmatprep.subr.mxu0 0.0
    %1000 = vmatpush1.msra.mxu0 0.0
    %1001 = vmatprep.subr.mxu0 0.0
    %1002 = vmatpush1.msra.mxu0 0.0
    %1003 = vmatprep.subr.mxu0 0.0
    %1004 = vmatpush1.msra.mxu0 0.0
    %1005 = vmatprep.subr.mxu0 0.0
    %1006 = vmatpush1.msra.mxu0 0.0
    %1007 = vmatprep.subr.mxu0 0.0
    %1008 = vmatpush1.msra.mxu0 0.0
    %1009 = vmatprep.subr.mxu0 0.0
    %1010 = vmatpush1.msra.mxu0 0.0
    %1011 = vmatprep.subr.mxu0 0.0
    %1012 = vmatpush1.msra.mxu0 0.0
    %1013 = vmatprep.subr.mxu0 0.0
    %1014 = vmatpush1.msra.mxu0 0.0
    %1015 = vmatprep.mubr.f32.mxu0 0.0
    %1016 = vmatmul.mubr.f32.gmra.mrb[0].mxu0 %v949
    %v1017 = vpop.f32.mrb[0].mxu0
    %v1018 = vadd.f32 0.0, %v1017
    %v1019 = vpop.f32.mrb[0].mxu0
    %1020 = vdwg.mxu0
    %v1021 = vadd.f32 %v189, %v1018
    %v1022 = vxor.u32 %v1021, 2147483648
    %v1023 = vmul.f32 %v1022, 1.442695
    %v1024 = vpow.pop %v1023
    %v1025 = vadd.f32 %v1024, 1.0
    %v1026 = vrcp.pop %v1025
    %v1027 = vmul.f32 1.0, %v1026
    %v1028 = vtanh.pop %v1021
    %v1029 = vmul.f32 %v1027, %v945
    %1031 = vrot.lane.b32.xlu0 %v1028, 32
    %v1032 = vpop.permute.xlu0 %1031
    %v1034 = vmul.f32 %v1027, %v1032
    %1036 = vrot.lane.b32.xlu0 %v1034, 32
    %v1037 = vpop.permute.xlu0 %1036
    %v1039 = vadd.f32 %v1029, %v1037
    %v1040 = vtanh.pop %v1039
    %1042 = vrot.lane.b32.xlu0 %v1040, 32
    %v1043 = vpop.permute.xlu0 %1042
    %v1045 = vmul.f32 %v1027, %v1043
    %vm1046 = vcmp.gt.s32.totalorder %v38, 7
    %v1047 = vsel %vm1046, 1, 0
    %1048 = vset.pattern.permute.xlu0 0
    %1049 = vperm.xlu0 %1048, %v1047
    %v1050 = vpop.permute.xlu0 %1049
    %vm1051 = vcmp.eq.s32.totalorder %v1050, 1
    %v1052 = vsel %vm1051, %v1045, %v944
    %v1053 = vsel %vm1051, %v1039, %v945
    %1055 = vrot.lane.b32.xlu0 %v1052, 64
    %v1056 = vpop.permute.xlu0 %1055
    %1058 = vst.msk [vmem:[#allocation5] sm:$0xff] %vm62, %v1056
    %1060 = vrot.lane.b32.xlu0 %v1053, 96
    %v1061 = vpop.permute.xlu0 %1060
    %1063 = vst.msk [vmem:[#allocation6] sm:$0xff] %vm62, %v1061
    %s1064 = scalar_lea.vmem %s2, 32
    %v1065 = vld [vmem:[%s1064] sm:$0xff]
    %v1066 = vld [vmem:[%s1064 + $0x8] sm:$0xff]
    %v1067 = vld [vmem:[%s1064 + $0x10] sm:$0xff]
    %v1068 = vld [vmem:[%s1064 + $0x18] sm:$0xff]
    %s1069 = scalar_lea.vmem [#allocation2], 32
    %v1070 = vld [vmem:[%s1069] sm:$0xff]
    %v1071 = vld [vmem:[%s1069 + $0x8] sm:$0xff]
    %v1072 = vld [vmem:[%s1069 + $0x10] sm:$0xff]
    %v1073 = vld [vmem:[%s1069 + $0x18] sm:$0xff]
    %s1074 = scalar_lea.vmem %s4, 1
    %v1075 = vld [vmem:[%s1074] sm:$0x1]
    %v1077 = vlaneseq
    %v1078 = vshrl.u32 %v1077, 7
    %v1079 = vsub.s32 0, %v1078
    %v1080 = vrot.slane %v1075, %v1079
    %v1082 = vsel %vm62, %v1056, 0
    %1084 = vmatprep.subr.mxu0 0.0
    %1085 = vmatpush1.msra.mxu0 %v1065
    %1086 = vmatprep.subr.mxu0 0.0
    %1087 = vmatpush1.msra.mxu0 %v1066
    %1088 = vmatprep.subr.mxu0 0.0
    %1089 = vmatpush1.msra.mxu0 %v1067
    %1090 = vmatprep.subr.mxu0 0.0
    %1091 = vmatpush1.msra.mxu0 %v1068
    %1092 = vmatprep.subr.mxu0 0.0
    %1093 = vmatpush1.msra.mxu0 0.0
    %1094 = vmatprep.subr.mxu0 0.0
    %1095 = vmatpush1.msra.mxu0 0.0
    %1096 = vmatprep.subr.mxu0 0.0
    %1097 = vmatpush1.msra.mxu0 0.0
    %1098 = vmatprep.subr.mxu0 0.0
    %1099 = vmatpush1.msra.mxu0 0.0
    %1100 = vmatprep.subr.mxu0 0.0
    %1101 = vmatpush1.msra.mxu0 0.0
    %1102 = vmatprep.subr.mxu0 0.0
    %1103 = vmatpush1.msra.mxu0 0.0
    %1104 = vmatprep.subr.mxu0 0.0
    %1105 = vmatpush1.msra.mxu0 0.0
    %1106 = vmatprep.subr.mxu0 0.0
    %1107 = vmatpush1.msra.mxu0 0.0
    %1108 = vmatprep.subr.mxu0 0.0
    %1109 = vmatpush1.msra.mxu0 0.0
    %1110 = vmatprep.subr.mxu0 0.0
    %1111 = vmatpush1.msra.mxu0 0.0
    %1112 = vmatprep.subr.mxu0 0.0
    %1113 = vmatpush1.msra.mxu0 0.0
    %1114 = vmatprep.subr.mxu0 0.0
    %1115 = vmatpush1.msra.mxu0 0.0
    %1116 = vmatprep.subr.mxu0 0.0
    %1117 = vmatpush1.msra.mxu0 0.0
    %1118 = vmatprep.subr.mxu0 0.0
    %1119 = vmatpush1.msra.mxu0 0.0
    %1120 = vmatprep.subr.mxu0 0.0
    %1121 = vmatpush1.msra.mxu0 0.0
    %1122 = vmatprep.subr.mxu0 0.0
    %1123 = vmatpush1.msra.mxu0 0.0
    %1124 = vmatprep.subr.mxu0 0.0
    %1125 = vmatpush1.msra.mxu0 0.0
    %1126 = vmatprep.subr.mxu0 0.0
    %1127 = vmatpush1.msra.mxu0 0.0
    %1128 = vmatprep.subr.mxu0 0.0
    %1129 = vmatpush1.msra.mxu0 0.0
    %1130 = vmatprep.subr.mxu0 0.0
    %1131 = vmatpush1.msra.mxu0 0.0
    %1132 = vmatprep.subr.mxu0 0.0
    %1133 = vmatpush1.msra.mxu0 0.0
    %1134 = vmatprep.subr.mxu0 0.0
    %1135 = vmatpush1.msra.mxu0 0.0
    %1136 = vmatprep.subr.mxu0 0.0
    %1137 = vmatpush1.msra.mxu0 0.0
    %1138 = vmatprep.subr.mxu0 0.0
    %1139 = vmatpush1.msra.mxu0 0.0
    %1140 = vmatprep.subr.mxu0 0.0
    %1141 = vmatpush1.msra.mxu0 0.0
    %1142 = vmatprep.subr.mxu0 0.0
    %1143 = vmatpush1.msra.mxu0 0.0
    %1144 = vmatprep.subr.mxu0 0.0
    %1145 = vmatpush1.msra.mxu0 0.0
    %1146 = vmatprep.subr.mxu0 0.0
    %1147 = vmatpush1.msra.mxu0 0.0
    %1148 = vmatprep.mubr.f32.mxu0 0.0
    %1149 = vmatmul.mubr.f32.gmra.mrb[0].mxu0 %v301
    %v1150 = vpop.f32.mrb[0].mxu0
    %v1151 = vadd.f32 %v1080, %v1150
    %v1152 = vpop.f32.mrb[0].mxu0
    %1153 = vmatprep.mubr.f32.mxu0 0.0
    %1154 = vmatmul.mubr.f32.gmra.mrb[0].mxu0 %v409
    %v1155 = vpop.f32.mrb[0].mxu0
    %v1156 = vadd.f32 %v1080, %v1155
    %v1157 = vpop.f32.mrb[0].mxu0
    %1158 = vmatprep.mubr.f32.mxu0 0.0
    %1159 = vmatmul.mubr.f32.gmra.mrb[0].mxu0 %v517
    %v1160 = vpop.f32.mrb[0].mxu0
    %v1161 = vadd.f32 %v1080, %v1160
    %v1162 = vpop.f32.mrb[0].mxu0
    %1163 = vmatprep.mubr.f32.mxu0 0.0
    %1164 = vmatmul.mubr.f32.gmra.mrb[0].mxu0 %v625
    %v1165 = vpop.f32.mrb[0].mxu0
    %v1166 = vadd.f32 %v1080, %v1165
    %v1167 = vpop.f32.mrb[0].mxu0
    %1168 = vmatprep.mubr.f32.mxu0 0.0
    %1169 = vmatmul.mubr.f32.gmra.mrb[0].mxu0 %v733
    %v1170 = vpop.f32.mrb[0].mxu0
    %v1171 = vadd.f32 %v1080, %v1170
    %v1172 = vpop.f32.mrb[0].mxu0
    %1173 = vmatprep.mubr.f32.mxu0 0.0
    %1174 = vmatmul.mubr.f32.gmra.mrb[0].mxu0 %v841
    %v1175 = vpop.f32.mrb[0].mxu0
    %v1176 = vadd.f32 %v1080, %v1175
    %v1177 = vpop.f32.mrb[0].mxu0
    %1178 = vmatprep.mubr.f32.mxu0 0.0
    %1179 = vmatmul.mubr.f32.gmra.mrb[0].mxu0 %v949
    %v1180 = vpop.f32.mrb[0].mxu0
    %v1181 = vadd.f32 %v1080, %v1180
    %v1182 = vpop.f32.mrb[0].mxu0
    %1183 = vmatprep.mubr.f32.mxu0 0.0
    %1184 = vmatmul.mubr.f32.gmra.mrb[0].mxu0 %v1082
    %v1185 = vpop.f32.mrb[0].mxu0
    %v1186 = vadd.f32 %v1080, %v1185
    %v1187 = vpop.f32.mrb[0].mxu0
    %1188 = vdwg.mxu0
    %1189 = vmatprep.subr.mxu0 0.0
    %1190 = vmatpush1.msra.mxu0 %v1070
    %1191 = vmatprep.subr.mxu0 0.0
    %1192 = vmatpush1.msra.mxu0 %v1071
    %1193 = vmatprep.subr.mxu0 0.0
    %1194 = vmatpush1.msra.mxu0 %v1072
    %1195 = vmatprep.subr.mxu0 0.0
    %1196 = vmatpush1.msra.mxu0 %v1073
    %1197 = vmatprep.subr.mxu0 0.0
    %1198 = vmatpush1.msra.mxu0 0.0
    %1199 = vmatprep.subr.mxu0 0.0
    %1200 = vmatpush1.msra.mxu0 0.0
    %1201 = vmatprep.subr.mxu0 0.0
    %1202 = vmatpush1.msra.mxu0 0.0
    %1203 = vmatprep.subr.mxu0 0.0
    %1204 = vmatpush1.msra.mxu0 0.0
    %1205 = vmatprep.subr.mxu0 0.0
    %1206 = vmatpush1.msra.mxu0 0.0
    %1207 = vmatprep.subr.mxu0 0.0
    %1208 = vmatpush1.msra.mxu0 0.0
    %1209 = vmatprep.subr.mxu0 0.0
    %1210 = vmatpush1.msra.mxu0 0.0
    %1211 = vmatprep.subr.mxu0 0.0
    %1212 = vmatpush1.msra.mxu0 0.0
    %1213 = vmatprep.subr.mxu0 0.0
    %1214 = vmatpush1.msra.mxu0 0.0
    %1215 = vmatprep.subr.mxu0 0.0
    %1216 = vmatpush1.msra.mxu0 0.0
    %1217 = vmatprep.subr.mxu0 0.0
    %1218 = vmatpush1.msra.mxu0 0.0
    %1219 = vmatprep.subr.mxu0 0.0
    %1220 = vmatpush1.msra.mxu0 0.0
    %1221 = vmatprep.subr.mxu0 0.0
    %1222 = vmatpush1.msra.mxu0 0.0
    %1223 = vmatprep.subr.mxu0 0.0
    %1224 = vmatpush1.msra.mxu0 0.0
    %1225 = vmatprep.subr.mxu0 0.0
    %1226 = vmatpush1.msra.mxu0 0.0
    %1227 = vmatprep.subr.mxu0 0.0
    %1228 = vmatpush1.msra.mxu0 0.0
    %1229 = vmatprep.subr.mxu0 0.0
    %1230 = vmatpush1.msra.mxu0 0.0
    %1231 = vmatprep.subr.mxu0 0.0
    %1232 = vmatpush1.msra.mxu0 0.0
    %1233 = vmatprep.subr.mxu0 0.0
    %1234 = vmatpush1.msra.mxu0 0.0
    %1235 = vmatprep.subr.mxu0 0.0
    %1236 = vmatpush1.msra.mxu0 0.0
    %1237 = vmatprep.subr.mxu0 0.0
    %1238 = vmatpush1.msra.mxu0 0.0
    %1239 = vmatprep.subr.mxu0 0.0
    %1240 = vmatpush1.msra.mxu0 0.0
    %1241 = vmatprep.subr.mxu0 0.0
    %1242 = vmatpush1.msra.mxu0 0.0
    %1243 = vmatprep.subr.mxu0 0.0
    %1244 = vmatpush1.msra.mxu0 0.0
    %1245 = vmatprep.subr.mxu0 0.0
    %1246 = vmatpush1.msra.mxu0 0.0
    %1247 = vmatprep.subr.mxu0 0.0
    %1248 = vmatpush1.msra.mxu0 0.0
    %1249 = vmatprep.subr.mxu0 0.0
    %1250 = vmatpush1.msra.mxu0 0.0
    %1251 = vmatprep.subr.mxu0 0.0
    %1252 = vmatpush1.msra.mxu0 0.0
    %1253 = vmatprep.mubr.f32.mxu0 0.0
    %1254 = vmatmul.mubr.f32.gmra.mrb[0].mxu0 %v193
    %v1255 = vpop.f32.mrb[0].mxu0
    %v1256 = vadd.f32 0.0, %v1255
    %v1257 = vpop.f32.mrb[0].mxu0
    %1258 = vdwg.mxu0
    %v1259 = vadd.f32 %v1151, %v1256
    %v1260 = vxor.u32 %v1259, 2147483648
    %v1261 = vmul.f32 %v1260, 1.442695
    %v1262 = vpow.pop %v1261
    %v1263 = vadd.f32 %v1262, 1.0
    %v1264 = vrcp.pop %v1263
    %v1265 = vmul.f32 1.0, %v1264
    %v1266 = vtanh.pop %v1259
    %v1267 = vmul.f32 %v1265, 0.0
    %1269 = vrot.lane.b32.xlu0 %v1266, 32
    %v1270 = vpop.permute.xlu0 %1269
    %v1272 = vmul.f32 %v1265, %v1270
    %1274 = vrot.lane.b32.xlu0 %v1272, 32
    %v1275 = vpop.permute.xlu0 %1274
    %v1277 = vadd.f32 %v1267, %v1275
    %v1278 = vtanh.pop %v1277
    %1280 = vrot.lane.b32.xlu0 %v1278, 32
    %v1281 = vpop.permute.xlu0 %1280
    %v1283 = vmul.f32 %v1265, %v1281
    %v1284 = vsel %vm295, %v1283, 0.0
    %v1285 = vsel %vm295, %v1277, 0.0
    %1287 = vrot.lane.b32.xlu0 %v1284, 64
    %v1288 = vpop.permute.xlu0 %1287
    %v1289 = vsel %vm62, %v1288, 0
    %1291 = vmatprep.subr.mxu0 0.0
    %1292 = vmatpush1.msra.mxu0 %v1070
    %1293 = vmatprep.subr.mxu0 0.0
    %1294 = vmatpush1.msra.mxu0 %v1071
    %1295 = vmatprep.subr.mxu0 0.0
    %1296 = vmatpush1.msra.mxu0 %v1072
    %1297 = vmatprep.subr.mxu0 0.0
    %1298 = vmatpush1.msra.mxu0 %v1073
    %1299 = vmatprep.subr.mxu0 0.0
    %1300 = vmatpush1.msra.mxu0 0.0
    %1301 = vmatprep.subr.mxu0 0.0
    %1302 = vmatpush1.msra.mxu0 0.0
    %1303 = vmatprep.subr.mxu0 0.0
    %1304 = vmatpush1.msra.mxu0 0.0
    %1305 = vmatprep.subr.mxu0 0.0
    %1306 = vmatpush1.msra.mxu0 0.0
    %1307 = vmatprep.subr.mxu0 0.0
    %1308 = vmatpush1.msra.mxu0 0.0
    %1309 = vmatprep.subr.mxu0 0.0
    %1310 = vmatpush1.msra.mxu0 0.0
    %1311 = vmatprep.subr.mxu0 0.0
    %1312 = vmatpush1.msra.mxu0 0.0
    %1313 = vmatprep.subr.mxu0 0.0
    %1314 = vmatpush1.msra.mxu0 0.0
    %1315 = vmatprep.subr.mxu0 0.0
    %1316 = vmatpush1.msra.mxu0 0.0
    %1317 = vmatprep.subr.mxu0 0.0
    %1318 = vmatpush1.msra.mxu0 0.0
    %1319 = vmatprep.subr.mxu0 0.0
    %1320 = vmatpush1.msra.mxu0 0.0
    %1321 = vmatprep.subr.mxu0 0.0
    %1322 = vmatpush1.msra.mxu0 0.0
    %1323 = vmatprep.subr.mxu0 0.0
    %1324 = vmatpush1.msra.mxu0 0.0
    %1325 = vmatprep.subr.mxu0 0.0
    %1326 = vmatpush1.msra.mxu0 0.0
    %1327 = vmatprep.subr.mxu0 0.0
    %1328 = vmatpush1.msra.mxu0 0.0
    %1329 = vmatprep.subr.mxu0 0.0
    %1330 = vmatpush1.msra.mxu0 0.0
    %1331 = vmatprep.subr.mxu0 0.0
    %1332 = vmatpush1.msra.mxu0 0.0
    %1333 = vmatprep.subr.mxu0 0.0
    %1334 = vmatpush1.msra.mxu0 0.0
    %1335 = vmatprep.subr.mxu0 0.0
    %1336 = vmatpush1.msra.mxu0 0.0
    %1337 = vmatprep.subr.mxu0 0.0
    %1338 = vmatpush1.msra.mxu0 0.0
    %1339 = vmatprep.subr.mxu0 0.0
    %1340 = vmatpush1.msra.mxu0 0.0
    %1341 = vmatprep.subr.mxu0 0.0
    %1342 = vmatpush1.msra.mxu0 0.0
    %1343 = vmatprep.subr.mxu0 0.0
    %1344 = vmatpush1.msra.mxu0 0.0
    %1345 = vmatprep.subr.mxu0 0.0
    %1346 = vmatpush1.msra.mxu0 0.0
    %1347 = vmatprep.subr.mxu0 0.0
    %1348 = vmatpush1.msra.mxu0 0.0
    %1349 = vmatprep.subr.mxu0 0.0
    %1350 = vmatpush1.msra.mxu0 0.0
    %1351 = vmatprep.subr.mxu0 0.0
    %1352 = vmatpush1.msra.mxu0 0.0
    %1353 = vmatprep.subr.mxu0 0.0
    %1354 = vmatpush1.msra.mxu0 0.0
    %1355 = vmatprep.mubr.f32.mxu0 0.0
    %1356 = vmatmul.mubr.f32.gmra.mrb[0].mxu0 %v1289
    %v1357 = vpop.f32.mrb[0].mxu0
    %v1358 = vadd.f32 0.0, %v1357
    %v1359 = vpop.f32.mrb[0].mxu0
    %1360 = vdwg.mxu0
    %v1361 = vadd.f32 %v1156, %v1358
    %v1362 = vxor.u32 %v1361, 2147483648
    %v1363 = vmul.f32 %v1362, 1.442695
    %v1364 = vpow.pop %v1363
    %v1365 = vadd.f32 %v1364, 1.0
    %v1366 = vrcp.pop %v1365
    %v1367 = vmul.f32 1.0, %v1366
    %v1368 = vtanh.pop %v1361
    %v1369 = vmul.f32 %v1367, %v1285
    %1371 = vrot.lane.b32.xlu0 %v1368, 32
    %v1372 = vpop.permute.xlu0 %1371
    %v1374 = vmul.f32 %v1367, %v1372
    %1376 = vrot.lane.b32.xlu0 %v1374, 32
    %v1377 = vpop.permute.xlu0 %1376
    %v1379 = vadd.f32 %v1369, %v1377
    %v1380 = vtanh.pop %v1379
    %1382 = vrot.lane.b32.xlu0 %v1380, 32
    %v1383 = vpop.permute.xlu0 %1382
    %v1385 = vmul.f32 %v1367, %v1383
    %v1386 = vsel %vm403, %v1385, %v1284
    %v1387 = vsel %vm403, %v1379, %v1285
    %1389 = vrot.lane.b32.xlu0 %v1386, 64
    %v1390 = vpop.permute.xlu0 %1389
    %v1391 = vsel %vm62, %v1390, 0
    %1393 = vmatprep.subr.mxu0 0.0
    %1394 = vmatpush1.msra.mxu0 %v1070
    %1395 = vmatprep.subr.mxu0 0.0
    %1396 = vmatpush1.msra.mxu0 %v1071
    %1397 = vmatprep.subr.mxu0 0.0
    %1398 = vmatpush1.msra.mxu0 %v1072
    %1399 = vmatprep.subr.mxu0 0.0
    %1400 = vmatpush1.msra.mxu0 %v1073
    %1401 = vmatprep.subr.mxu0 0.0
    %1402 = vmatpush1.msra.mxu0 0.0
    %1403 = vmatprep.subr.mxu0 0.0
    %1404 = vmatpush1.msra.mxu0 0.0
    %1405 = vmatprep.subr.mxu0 0.0
    %1406 = vmatpush1.msra.mxu0 0.0
    %1407 = vmatprep.subr.mxu0 0.0
    %1408 = vmatpush1.msra.mxu0 0.0
    %1409 = vmatprep.subr.mxu0 0.0
    %1410 = vmatpush1.msra.mxu0 0.0
    %1411 = vmatprep.subr.mxu0 0.0
    %1412 = vmatpush1.msra.mxu0 0.0
    %1413 = vmatprep.subr.mxu0 0.0
    %1414 = vmatpush1.msra.mxu0 0.0
    %1415 = vmatprep.subr.mxu0 0.0
    %1416 = vmatpush1.msra.mxu0 0.0
    %1417 = vmatprep.subr.mxu0 0.0
    %1418 = vmatpush1.msra.mxu0 0.0
    %1419 = vmatprep.subr.mxu0 0.0
    %1420 = vmatpush1.msra.mxu0 0.0
    %1421 = vmatprep.subr.mxu0 0.0
    %1422 = vmatpush1.msra.mxu0 0.0
    %1423 = vmatprep.subr.mxu0 0.0
    %1424 = vmatpush1.msra.mxu0 0.0
    %1425 = vmatprep.subr.mxu0 0.0
    %1426 = vmatpush1.msra.mxu0 0.0
    %1427 = vmatprep.subr.mxu0 0.0
    %1428 = vmatpush1.msra.mxu0 0.0
    %1429 = vmatprep.subr.mxu0 0.0
    %1430 = vmatpush1.msra.mxu0 0.0
    %1431 = vmatprep.subr.mxu0 0.0
    %1432 = vmatpush1.msra.mxu0 0.0
    %1433 = vmatprep.subr.mxu0 0.0
    %1434 = vmatpush1.msra.mxu0 0.0
    %1435 = vmatprep.subr.mxu0 0.0
    %1436 = vmatpush1.msra.mxu0 0.0
    %1437 = vmatprep.subr.mxu0 0.0
    %1438 = vmatpush1.msra.mxu0 0.0
    %1439 = vmatprep.subr.mxu0 0.0
    %1440 = vmatpush1.msra.mxu0 0.0
    %1441 = vmatprep.subr.mxu0 0.0
    %1442 = vmatpush1.msra.mxu0 0.0
    %1443 = vmatprep.subr.mxu0 0.0
    %1444 = vmatpush1.msra.mxu0 0.0
    %1445 = vmatprep.subr.mxu0 0.0
    %1446 = vmatpush1.msra.mxu0 0.0
    %1447 = vmatprep.subr.mxu0 0.0
    %1448 = vmatpush1.msra.mxu0 0.0
    %1449 = vmatprep.subr.mxu0 0.0
    %1450 = vmatpush1.msra.mxu0 0.0
    %1451 = vmatprep.subr.mxu0 0.0
    %1452 = vmatpush1.msra.mxu0 0.0
    %1453 = vmatprep.subr.mxu0 0.0
    %1454 = vmatpush1.msra.mxu0 0.0
    %1455 = vmatprep.subr.mxu0 0.0
    %1456 = vmatpush1.msra.mxu0 0.0
    %1457 = vmatprep.mubr.f32.mxu0 0.0
    %1458 = vmatmul.mubr.f32.gmra.mrb[0].mxu0 %v1391
    %v1459 = vpop.f32.mrb[0].mxu0
    %v1460 = vadd.f32 0.0, %v1459
    %v1461 = vpop.f32.mrb[0].mxu0
    %1462 = vdwg.mxu0
    %v1463 = vadd.f32 %v1161, %v1460
    %v1464 = vxor.u32 %v1463, 2147483648
    %v1465 = vmul.f32 %v1464, 1.442695
    %v1466 = vpow.pop %v1465
    %v1467 = vadd.f32 %v1466, 1.0
    %v1468 = vrcp.pop %v1467
    %v1469 = vmul.f32 1.0, %v1468
    %v1470 = vtanh.pop %v1463
    %v1471 = vmul.f32 %v1469, %v1387
    %1473 = vrot.lane.b32.xlu0 %v1470, 32
    %v1474 = vpop.permute.xlu0 %1473
    %v1476 = vmul.f32 %v1469, %v1474
    %1478 = vrot.lane.b32.xlu0 %v1476, 32
    %v1479 = vpop.permute.xlu0 %1478
    %v1481 = vadd.f32 %v1471, %v1479
    %v1482 = vtanh.pop %v1481
    %1484 = vrot.lane.b32.xlu0 %v1482, 32
    %v1485 = vpop.permute.xlu0 %1484
    %v1487 = vmul.f32 %v1469, %v1485
    %v1488 = vsel %vm511, %v1487, %v1386
    %v1489 = vsel %vm511, %v1481, %v1387
    %1491 = vrot.lane.b32.xlu0 %v1488, 64
    %v1492 = vpop.permute.xlu0 %1491
    %v1493 = vsel %vm62, %v1492, 0
    %1495 = vmatprep.subr.mxu0 0.0
    %1496 = vmatpush1.msra.mxu0 %v1070
    %1497 = vmatprep.subr.mxu0 0.0
    %1498 = vmatpush1.msra.mxu0 %v1071
    %1499 = vmatprep.subr.mxu0 0.0
    %1500 = vmatpush1.msra.mxu0 %v1072
    %1501 = vmatprep.subr.mxu0 0.0
    %1502 = vmatpush1.msra.mxu0 %v1073
    %1503 = vmatprep.subr.mxu0 0.0
    %1504 = vmatpush1.msra.mxu0 0.0
    %1505 = vmatprep.subr.mxu0 0.0
    %1506 = vmatpush1.msra.mxu0 0.0
    %1507 = vmatprep.subr.mxu0 0.0
    %1508 = vmatpush1.msra.mxu0 0.0
    %1509 = vmatprep.subr.mxu0 0.0
    %1510 = vmatpush1.msra.mxu0 0.0
    %1511 = vmatprep.subr.mxu0 0.0
    %1512 = vmatpush1.msra.mxu0 0.0
    %1513 = vmatprep.subr.mxu0 0.0
    %1514 = vmatpush1.msra.mxu0 0.0
    %1515 = vmatprep.subr.mxu0 0.0
    %1516 = vmatpush1.msra.mxu0 0.0
    %1517 = vmatprep.subr.mxu0 0.0
    %1518 = vmatpush1.msra.mxu0 0.0
    %1519 = vmatprep.subr.mxu0 0.0
    %1520 = vmatpush1.msra.mxu0 0.0
    %1521 = vmatprep.subr.mxu0 0.0
    %1522 = vmatpush1.msra.mxu0 0.0
    %1523 = vmatprep.subr.mxu0 0.0
    %1524 = vmatpush1.msra.mxu0 0.0
    %1525 = vmatprep.subr.mxu0 0.0
    %1526 = vmatpush1.msra.mxu0 0.0
    %1527 = vmatprep.subr.mxu0 0.0
    %1528 = vmatpush1.msra.mxu0 0.0
    %1529 = vmatprep.subr.mxu0 0.0
    %1530 = vmatpush1.msra.mxu0 0.0
    %1531 = vmatprep.subr.mxu0 0.0
    %1532 = vmatpush1.msra.mxu0 0.0
    %1533 = vmatprep.subr.mxu0 0.0
    %1534 = vmatpush1.msra.mxu0 0.0
    %1535 = vmatprep.subr.mxu0 0.0
    %1536 = vmatpush1.msra.mxu0 0.0
    %1537 = vmatprep.subr.mxu0 0.0
    %1538 = vmatpush1.msra.mxu0 0.0
    %1539 = vmatprep.subr.mxu0 0.0
    %1540 = vmatpush1.msra.mxu0 0.0
    %1541 = vmatprep.subr.mxu0 0.0
    %1542 = vmatpush1.msra.mxu0 0.0
    %1543 = vmatprep.subr.mxu0 0.0
    %1544 = vmatpush1.msra.mxu0 0.0
    %1545 = vmatprep.subr.mxu0 0.0
    %1546 = vmatpush1.msra.mxu0 0.0
    %1547 = vmatprep.subr.mxu0 0.0
    %1548 = vmatpush1.msra.mxu0 0.0
    %1549 = vmatprep.subr.mxu0 0.0
    %1550 = vmatpush1.msra.mxu0 0.0
    %1551 = vmatprep.subr.mxu0 0.0
    %1552 = vmatpush1.msra.mxu0 0.0
    %1553 = vmatprep.subr.mxu0 0.0
    %1554 = vmatpush1.msra.mxu0 0.0
    %1555 = vmatprep.subr.mxu0 0.0
    %1556 = vmatpush1.msra.mxu0 0.0
    %1557 = vmatprep.subr.mxu0 0.0
    %1558 = vmatpush1.msra.mxu0 0.0
    %1559 = vmatprep.mubr.f32.mxu0 0.0
    %1560 = vmatmul.mubr.f32.gmra.mrb[0].mxu0 %v1493
    %v1561 = vpop.f32.mrb[0].mxu0
    %v1562 = vadd.f32 0.0, %v1561
    %v1563 = vpop.f32.mrb[0].mxu0
    %1564 = vdwg.mxu0
    %v1565 = vadd.f32 %v1166, %v1562
    %v1566 = vxor.u32 %v1565, 2147483648
    %v1567 = vmul.f32 %v1566, 1.442695
    %v1568 = vpow.pop %v1567
    %v1569 = vadd.f32 %v1568, 1.0
    %v1570 = vrcp.pop %v1569
    %v1571 = vmul.f32 1.0, %v1570
    %v1572 = vtanh.pop %v1565
    %v1573 = vmul.f32 %v1571, %v1489
    %1575 = vrot.lane.b32.xlu0 %v1572, 32
    %v1576 = vpop.permute.xlu0 %1575
    %v1578 = vmul.f32 %v1571, %v1576
    %1580 = vrot.lane.b32.xlu0 %v1578, 32
    %v1581 = vpop.permute.xlu0 %1580
    %v1583 = vadd.f32 %v1573, %v1581
    %v1584 = vtanh.pop %v1583
    %1586 = vrot.lane.b32.xlu0 %v1584, 32
    %v1587 = vpop.permute.xlu0 %1586
    %v1589 = vmul.f32 %v1571, %v1587
    %v1590 = vsel %vm619, %v1589, %v1488
    %v1591 = vsel %vm619, %v1583, %v1489
    %1593 = vrot.lane.b32.xlu0 %v1590, 64
    %v1594 = vpop.permute.xlu0 %1593
    %v1595 = vsel %vm62, %v1594, 0
    %1597 = vmatprep.subr.mxu0 0.0
    %1598 = vmatpush1.msra.mxu0 %v1070
    %1599 = vmatprep.subr.mxu0 0.0
    %1600 = vmatpush1.msra.mxu0 %v1071
    %1601 = vmatprep.subr.mxu0 0.0
    %1602 = vmatpush1.msra.mxu0 %v1072
    %1603 = vmatprep.subr.mxu0 0.0
    %1604 = vmatpush1.msra.mxu0 %v1073
    %1605 = vmatprep.subr.mxu0 0.0
    %1606 = vmatpush1.msra.mxu0 0.0
    %1607 = vmatprep.subr.mxu0 0.0
    %1608 = vmatpush1.msra.mxu0 0.0
    %1609 = vmatprep.subr.mxu0 0.0
    %1610 = vmatpush1.msra.mxu0 0.0
    %1611 = vmatprep.subr.mxu0 0.0
    %1612 = vmatpush1.msra.mxu0 0.0
    %1613 = vmatprep.subr.mxu0 0.0
    %1614 = vmatpush1.msra.mxu0 0.0
    %1615 = vmatprep.subr.mxu0 0.0
    %1616 = vmatpush1.msra.mxu0 0.0
    %1617 = vmatprep.subr.mxu0 0.0
    %1618 = vmatpush1.msra.mxu0 0.0
    %1619 = vmatprep.subr.mxu0 0.0
    %1620 = vmatpush1.msra.mxu0 0.0
    %1621 = vmatprep.subr.mxu0 0.0
    %1622 = vmatpush1.msra.mxu0 0.0
    %1623 = vmatprep.subr.mxu0 0.0
    %1624 = vmatpush1.msra.mxu0 0.0
    %1625 = vmatprep.subr.mxu0 0.0
    %1626 = vmatpush1.msra.mxu0 0.0
    %1627 = vmatprep.subr.mxu0 0.0
    %1628 = vmatpush1.msra.mxu0 0.0
    %1629 = vmatprep.subr.mxu0 0.0
    %1630 = vmatpush1.msra.mxu0 0.0
    %1631 = vmatprep.subr.mxu0 0.0
    %1632 = vmatpush1.msra.mxu0 0.0
    %1633 = vmatprep.subr.mxu0 0.0
    %1634 = vmatpush1.msra.mxu0 0.0
    %1635 = vmatprep.subr.mxu0 0.0
    %1636 = vmatpush1.msra.mxu0 0.0
    %1637 = vmatprep.subr.mxu0 0.0
    %1638 = vmatpush1.msra.mxu0 0.0
    %1639 = vmatprep.subr.mxu0 0.0
    %1640 = vmatpush1.msra.mxu0 0.0
    %1641 = vmatprep.subr.mxu0 0.0
    %1642 = vmatpush1.msra.mxu0 0.0
    %1643 = vmatprep.subr.mxu0 0.0
    %1644 = vmatpush1.msra.mxu0 0.0
    %1645 = vmatprep.subr.mxu0 0.0
    %1646 = vmatpush1.msra.mxu0 0.0
    %1647 = vmatprep.subr.mxu0 0.0
    %1648 = vmatpush1.msra.mxu0 0.0
    %1649 = vmatprep.subr.mxu0 0.0
    %1650 = vmatpush1.msra.mxu0 0.0
    %1651 = vmatprep.subr.mxu0 0.0
    %1652 = vmatpush1.msra.mxu0 0.0
    %1653 = vmatprep.subr.mxu0 0.0
    %1654 = vmatpush1.msra.mxu0 0.0
    %1655 = vmatprep.subr.mxu0 0.0
    %1656 = vmatpush1.msra.mxu0 0.0
    %1657 = vmatprep.subr.mxu0 0.0
    %1658 = vmatpush1.msra.mxu0 0.0
    %1659 = vmatprep.subr.mxu0 0.0
    %1660 = vmatpush1.msra.mxu0 0.0
    %1661 = vmatprep.mubr.f32.mxu0 0.0
    %1662 = vmatmul.mubr.f32.gmra.mrb[0].mxu0 %v1595
    %v1663 = vpop.f32.mrb[0].mxu0
    %v1664 = vadd.f32 0.0, %v1663
    %v1665 = vpop.f32.mrb[0].mxu0
    %1666 = vdwg.mxu0
    %v1667 = vadd.f32 %v1171, %v1664
    %v1668 = vxor.u32 %v1667, 2147483648
    %v1669 = vmul.f32 %v1668, 1.442695
    %v1670 = vpow.pop %v1669
    %v1671 = vadd.f32 %v1670, 1.0
    %v1672 = vrcp.pop %v1671
    %v1673 = vmul.f32 1.0, %v1672
    %v1674 = vtanh.pop %v1667
    %v1675 = vmul.f32 %v1673, %v1591
    %1677 = vrot.lane.b32.xlu0 %v1674, 32
    %v1678 = vpop.permute.xlu0 %1677
    %v1680 = vmul.f32 %v1673, %v1678
    %1682 = vrot.lane.b32.xlu0 %v1680, 32
    %v1683 = vpop.permute.xlu0 %1682
    %v1685 = vadd.f32 %v1675, %v1683
    %v1686 = vtanh.pop %v1685
    %1688 = vrot.lane.b32.xlu0 %v1686, 32
    %v1689 = vpop.permute.xlu0 %1688
    %v1691 = vmul.f32 %v1673, %v1689
    %v1692 = vsel %vm727, %v1691, %v1590
    %v1693 = vsel %vm727, %v1685, %v1591
    %1695 = vrot.lane.b32.xlu0 %v1692, 64
    %v1696 = vpop.permute.xlu0 %1695
    %v1697 = vsel %vm62, %v1696, 0
    %1699 = vmatprep.subr.mxu0 0.0
    %1700 = vmatpush1.msra.mxu0 %v1070
    %1701 = vmatprep.subr.mxu0 0.0
    %1702 = vmatpush1.msra.mxu0 %v1071
    %1703 = vmatprep.subr.mxu0 0.0
    %1704 = vmatpush1.msra.mxu0 %v1072
    %1705 = vmatprep.subr.mxu0 0.0
    %1706 = vmatpush1.msra.mxu0 %v1073
    %1707 = vmatprep.subr.mxu0 0.0
    %1708 = vmatpush1.msra.mxu0 0.0
    %1709 = vmatprep.subr.mxu0 0.0
    %1710 = vmatpush1.msra.mxu0 0.0
    %1711 = vmatprep.subr.mxu0 0.0
    %1712 = vmatpush1.msra.mxu0 0.0
    %1713 = vmatprep.subr.mxu0 0.0
    %1714 = vmatpush1.msra.mxu0 0.0
    %1715 = vmatprep.subr.mxu0 0.0
    %1716 = vmatpush1.msra.mxu0 0.0
    %1717 = vmatprep.subr.mxu0 0.0
    %1718 = vmatpush1.msra.mxu0 0.0
    %1719 = vmatprep.subr.mxu0 0.0
    %1720 = vmatpush1.msra.mxu0 0.0
    %1721 = vmatprep.subr.mxu0 0.0
    %1722 = vmatpush1.msra.mxu0 0.0
    %1723 = vmatprep.subr.mxu0 0.0
    %1724 = vmatpush1.msra.mxu0 0.0
    %1725 = vmatprep.subr.mxu0 0.0
    %1726 = vmatpush1.msra.mxu0 0.0
    %1727 = vmatprep.subr.mxu0 0.0
    %1728 = vmatpush1.msra.mxu0 0.0
    %1729 = vmatprep.subr.mxu0 0.0
    %1730 = vmatpush1.msra.mxu0 0.0
    %1731 = vmatprep.subr.mxu0 0.0
    %1732 = vmatpush1.msra.mxu0 0.0
    %1733 = vmatprep.subr.mxu0 0.0
    %1734 = vmatpush1.msra.mxu0 0.0
    %1735 = vmatprep.subr.mxu0 0.0
    %1736 = vmatpush1.msra.mxu0 0.0
    %1737 = vmatprep.subr.mxu0 0.0
    %1738 = vmatpush1.msra.mxu0 0.0
    %1739 = vmatprep.subr.mxu0 0.0
    %1740 = vmatpush1.msra.mxu0 0.0
    %1741 = vmatprep.subr.mxu0 0.0
    %1742 = vmatpush1.msra.mxu0 0.0
    %1743 = vmatprep.subr.mxu0 0.0
    %1744 = vmatpush1.msra.mxu0 0.0
    %1745 = vmatprep.subr.mxu0 0.0
    %1746 = vmatpush1.msra.mxu0 0.0
    %1747 = vmatprep.subr.mxu0 0.0
    %1748 = vmatpush1.msra.mxu0 0.0
    %1749 = vmatprep.subr.mxu0 0.0
    %1750 = vmatpush1.msra.mxu0 0.0
    %1751 = vmatprep.subr.mxu0 0.0
    %1752 = vmatpush1.msra.mxu0 0.0
    %1753 = vmatprep.subr.mxu0 0.0
    %1754 = vmatpush1.msra.mxu0 0.0
    %1755 = vmatprep.subr.mxu0 0.0
    %1756 = vmatpush1.msra.mxu0 0.0
    %1757 = vmatprep.subr.mxu0 0.0
    %1758 = vmatpush1.msra.mxu0 0.0
    %1759 = vmatprep.subr.mxu0 0.0
    %1760 = vmatpush1.msra.mxu0 0.0
    %1761 = vmatprep.subr.mxu0 0.0
    %1762 = vmatpush1.msra.mxu0 0.0
    %1763 = vmatprep.mubr.f32.mxu0 0.0
    %1764 = vmatmul.mubr.f32.gmra.mrb[0].mxu0 %v1697
    %v1765 = vpop.f32.mrb[0].mxu0
    %v1766 = vadd.f32 0.0, %v1765
    %v1767 = vpop.f32.mrb[0].mxu0
    %1768 = vdwg.mxu0
    %v1769 = vadd.f32 %v1176, %v1766
    %v1770 = vxor.u32 %v1769, 2147483648
    %v1771 = vmul.f32 %v1770, 1.442695
    %v1772 = vpow.pop %v1771
    %v1773 = vadd.f32 %v1772, 1.0
    %v1774 = vrcp.pop %v1773
    %v1775 = vmul.f32 1.0, %v1774
    %v1776 = vtanh.pop %v1769
    %v1777 = vmul.f32 %v1775, %v1693
    %1779 = vrot.lane.b32.xlu0 %v1776, 32
    %v1780 = vpop.permute.xlu0 %1779
    %v1782 = vmul.f32 %v1775, %v1780
    %1784 = vrot.lane.b32.xlu0 %v1782, 32
    %v1785 = vpop.permute.xlu0 %1784
    %v1787 = vadd.f32 %v1777, %v1785
    %v1788 = vtanh.pop %v1787
    %1790 = vrot.lane.b32.xlu0 %v1788, 32
    %v1791 = vpop.permute.xlu0 %1790
    %v1793 = vmul.f32 %v1775, %v1791
    %v1794 = vsel %vm835, %v1793, %v1692
    %v1795 = vsel %vm835, %v1787, %v1693
    %1797 = vrot.lane.b32.xlu0 %v1794, 64
    %v1798 = vpop.permute.xlu0 %1797
    %v1799 = vsel %vm62, %v1798, 0
    %1801 = vmatprep.subr.mxu0 0.0
    %1802 = vmatpush1.msra.mxu0 %v1070
    %1803 = vmatprep.subr.mxu0 0.0
    %1804 = vmatpush1.msra.mxu0 %v1071
    %1805 = vmatprep.subr.mxu0 0.0
    %1806 = vmatpush1.msra.mxu0 %v1072
    %1807 = vmatprep.subr.mxu0 0.0
    %1808 = vmatpush1.msra.mxu0 %v1073
    %1809 = vmatprep.subr.mxu0 0.0
    %1810 = vmatpush1.msra.mxu0 0.0
    %1811 = vmatprep.subr.mxu0 0.0
    %1812 = vmatpush1.msra.mxu0 0.0
    %1813 = vmatprep.subr.mxu0 0.0
    %1814 = vmatpush1.msra.mxu0 0.0
    %1815 = vmatprep.subr.mxu0 0.0
    %1816 = vmatpush1.msra.mxu0 0.0
    %1817 = vmatprep.subr.mxu0 0.0
    %1818 = vmatpush1.msra.mxu0 0.0
    %1819 = vmatprep.subr.mxu0 0.0
    %1820 = vmatpush1.msra.mxu0 0.0
    %1821 = vmatprep.subr.mxu0 0.0
    %1822 = vmatpush1.msra.mxu0 0.0
    %1823 = vmatprep.subr.mxu0 0.0
    %1824 = vmatpush1.msra.mxu0 0.0
    %1825 = vmatprep.subr.mxu0 0.0
    %1826 = vmatpush1.msra.mxu0 0.0
    %1827 = vmatprep.subr.mxu0 0.0
    %1828 = vmatpush1.msra.mxu0 0.0
    %1829 = vmatprep.subr.mxu0 0.0
    %1830 = vmatpush1.msra.mxu0 0.0
    %1831 = vmatprep.subr.mxu0 0.0
    %1832 = vmatpush1.msra.mxu0 0.0
    %1833 = vmatprep.subr.mxu0 0.0
    %1834 = vmatpush1.msra.mxu0 0.0
    %1835 = vmatprep.subr.mxu0 0.0
    %1836 = vmatpush1.msra.mxu0 0.0
    %1837 = vmatprep.subr.mxu0 0.0
    %1838 = vmatpush1.msra.mxu0 0.0
    %1839 = vmatprep.subr.mxu0 0.0
    %1840 = vmatpush1.msra.mxu0 0.0
    %1841 = vmatprep.subr.mxu0 0.0
    %1842 = vmatpush1.msra.mxu0 0.0
    %1843 = vmatprep.subr.mxu0 0.0
    %1844 = vmatpush1.msra.mxu0 0.0
    %1845 = vmatprep.subr.mxu0 0.0
    %1846 = vmatpush1.msra.mxu0 0.0
    %1847 = vmatprep.subr.mxu0 0.0
    %1848 = vmatpush1.msra.mxu0 0.0
    %1849 = vmatprep.subr.mxu0 0.0
    %1850 = vmatpush1.msra.mxu0 0.0
    %1851 = vmatprep.subr.mxu0 0.0
    %1852 = vmatpush1.msra.mxu0 0.0
    %1853 = vmatprep.subr.mxu0 0.0
    %1854 = vmatpush1.msra.mxu0 0.0
    %1855 = vmatprep.subr.mxu0 0.0
    %1856 = vmatpush1.msra.mxu0 0.0
    %1857 = vmatprep.subr.mxu0 0.0
    %1858 = vmatpush1.msra.mxu0 0.0
    %1859 = vmatprep.subr.mxu0 0.0
    %1860 = vmatpush1.msra.mxu0 0.0
    %1861 = vmatprep.subr.mxu0 0.0
    %1862 = vmatpush1.msra.mxu0 0.0
    %1863 = vmatprep.subr.mxu0 0.0
    %1864 = vmatpush1.msra.mxu0 0.0
    %1865 = vmatprep.mubr.f32.mxu0 0.0
    %1866 = vmatmul.mubr.f32.gmra.mrb[0].mxu0 %v1799
    %v1867 = vpop.f32.mrb[0].mxu0
    %v1868 = vadd.f32 0.0, %v1867
    %v1869 = vpop.f32.mrb[0].mxu0
    %1870 = vdwg.mxu0
    %v1871 = vadd.f32 %v1181, %v1868
    %v1872 = vxor.u32 %v1871, 2147483648
    %v1873 = vmul.f32 %v1872, 1.442695
    %v1874 = vpow.pop %v1873
    %v1875 = vadd.f32 %v1874, 1.0
    %v1876 = vrcp.pop %v1875
    %v1877 = vmul.f32 1.0, %v1876
    %v1878 = vtanh.pop %v1871
    %v1879 = vmul.f32 %v1877, %v1795
    %1881 = vrot.lane.b32.xlu0 %v1878, 32
    %v1882 = vpop.permute.xlu0 %1881
    %v1884 = vmul.f32 %v1877, %v1882
    %1886 = vrot.lane.b32.xlu0 %v1884, 32
    %v1887 = vpop.permute.xlu0 %1886
    %v1889 = vadd.f32 %v1879, %v1887
    %v1890 = vtanh.pop %v1889
    %1892 = vrot.lane.b32.xlu0 %v1890, 32
    %v1893 = vpop.permute.xlu0 %1892
    %v1895 = vmul.f32 %v1877, %v1893
    %v1896 = vsel %vm943, %v1895, %v1794
    %v1897 = vsel %vm943, %v1889, %v1795
    %1899 = vrot.lane.b32.xlu0 %v1896, 64
    %v1900 = vpop.permute.xlu0 %1899
    %v1901 = vsel %vm62, %v1900, 0
    %1903 = vmatprep.subr.mxu0 0.0
    %1904 = vmatpush1.msra.mxu0 %v1070
    %1905 = vmatprep.subr.mxu0 0.0
    %1906 = vmatpush1.msra.mxu0 %v1071
    %1907 = vmatprep.subr.mxu0 0.0
    %1908 = vmatpush1.msra.mxu0 %v1072
    %1909 = vmatprep.subr.mxu0 0.0
    %1910 = vmatpush1.msra.mxu0 %v1073
    %1911 = vmatprep.subr.mxu0 0.0
    %1912 = vmatpush1.msra.mxu0 0.0
    %1913 = vmatprep.subr.mxu0 0.0
    %1914 = vmatpush1.msra.mxu0 0.0
    %1915 = vmatprep.subr.mxu0 0.0
    %1916 = vmatpush1.msra.mxu0 0.0
    %1917 = vmatprep.subr.mxu0 0.0
    %1918 = vmatpush1.msra.mxu0 0.0
    %1919 = vmatprep.subr.mxu0 0.0
    %1920 = vmatpush1.msra.mxu0 0.0
    %1921 = vmatprep.subr.mxu0 0.0
    %1922 = vmatpush1.msra.mxu0 0.0
    %1923 = vmatprep.subr.mxu0 0.0
    %1924 = vmatpush1.msra.mxu0 0.0
    %1925 = vmatprep.subr.mxu0 0.0
    %1926 = vmatpush1.msra.mxu0 0.0
    %1927 = vmatprep.subr.mxu0 0.0
    %1928 = vmatpush1.msra.mxu0 0.0
    %1929 = vmatprep.subr.mxu0 0.0
    %1930 = vmatpush1.msra.mxu0 0.0
    %1931 = vmatprep.subr.mxu0 0.0
    %1932 = vmatpush1.msra.mxu0 0.0
    %1933 = vmatprep.subr.mxu0 0.0
    %1934 = vmatpush1.msra.mxu0 0.0
    %1935 = vmatprep.subr.mxu0 0.0
    %1936 = vmatpush1.msra.mxu0 0.0
    %1937 = vmatprep.subr.mxu0 0.0
    %1938 = vmatpush1.msra.mxu0 0.0
    %1939 = vmatprep.subr.mxu0 0.0
    %1940 = vmatpush1.msra.mxu0 0.0
    %1941 = vmatprep.subr.mxu0 0.0
    %1942 = vmatpush1.msra.mxu0 0.0
    %1943 = vmatprep.subr.mxu0 0.0
    %1944 = vmatpush1.msra.mxu0 0.0
    %1945 = vmatprep.subr.mxu0 0.0
    %1946 = vmatpush1.msra.mxu0 0.0
    %1947 = vmatprep.subr.mxu0 0.0
    %1948 = vmatpush1.msra.mxu0 0.0
    %1949 = vmatprep.subr.mxu0 0.0
    %1950 = vmatpush1.msra.mxu0 0.0
    %1951 = vmatprep.subr.mxu0 0.0
    %1952 = vmatpush1.msra.mxu0 0.0
    %1953 = vmatprep.subr.mxu0 0.0
    %1954 = vmatpush1.msra.mxu0 0.0
    %1955 = vmatprep.subr.mxu0 0.0
    %1956 = vmatpush1.msra.mxu0 0.0
    %1957 = vmatprep.subr.mxu0 0.0
    %1958 = vmatpush1.msra.mxu0 0.0
    %1959 = vmatprep.subr.mxu0 0.0
    %1960 = vmatpush1.msra.mxu0 0.0
    %1961 = vmatprep.subr.mxu0 0.0
    %1962 = vmatpush1.msra.mxu0 0.0
    %1963 = vmatprep.subr.mxu0 0.0
    %1964 = vmatpush1.msra.mxu0 0.0
    %1965 = vmatprep.subr.mxu0 0.0
    %1966 = vmatpush1.msra.mxu0 0.0
    %1967 = vmatprep.mubr.f32.mxu0 0.0
    %1968 = vmatmul.mubr.f32.gmra.mrb[0].mxu0 %v1901
    %v1969 = vpop.f32.mrb[0].mxu0
    %v1970 = vadd.f32 0.0, %v1969
    %v1971 = vpop.f32.mrb[0].mxu0
    %1972 = vdwg.mxu0
    %v1973 = vadd.f32 %v1186, %v1970
    %v1974 = vxor.u32 %v1973, 2147483648
    %v1975 = vmul.f32 %v1974, 1.442695
    %v1976 = vpow.pop %v1975
    %v1977 = vadd.f32 %v1976, 1.0
    %v1978 = vrcp.pop %v1977
    %v1979 = vmul.f32 1.0, %v1978
    %v1980 = vtanh.pop %v1973
    %v1981 = vmul.f32 %v1979, %v1897
    %1983 = vrot.lane.b32.xlu0 %v1980, 32
    %v1984 = vpop.permute.xlu0 %1983
    %v1986 = vmul.f32 %v1979, %v1984
    %1988 = vrot.lane.b32.xlu0 %v1986, 32
    %v1989 = vpop.permute.xlu0 %1988
    %v1991 = vadd.f32 %v1981, %v1989
    %v1992 = vtanh.pop %v1991
    %1994 = vrot.lane.b32.xlu0 %v1992, 32
    %v1995 = vpop.permute.xlu0 %1994
    %v1997 = vmul.f32 %v1979, %v1995
    %v1998 = vsel %vm1051, %v1997, %v1896
    %v1999 = vsel %vm1051, %v1991, %v1897
    %2001 = vrot.lane.b32.xlu0 %v1998, 64
    %v2002 = vpop.permute.xlu0 %2001
    %s2004 = scalar_lea.vmem [#allocation5], 8
    %2005 = vst.msk [vmem:[%s2004] sm:$0xff] %vm62, %v2002
    %2007 = vrot.lane.b32.xlu0 %v1999, 96
    %v2008 = vpop.permute.xlu0 %2007
    %s2010 = scalar_lea.vmem [#allocation6], 8
    %2011 = vst.msk [vmem:[%s2010] sm:$0xff] %vm62, %v2008
    // Predicated region
    $region26: #{tpu_custom_call.1} parent=1 // pred_check
      _
    $region27: #{tpu_custom_call.1} parent=1 // pred_check_branch
      %2013 = sbr.rel (0) target = $region29
    $region28: #{tpu_custom_call.1} parent=1 // pred_region
      %s2015 = ssub.s32 256, 256
      %2016 = vsyncadd [#allocation4], %s2015
      %s2017 = sshll.u32 [#allocation5], 4
      %s2018 = int_to_ptr.vmem [resolvable:$true] %s2017
      %2023 = dma.vmem_to_hbm [thread:$0]  %s2018, 256, %s5, [#allocation4], 128, 128, 8
    $region29: #{tpu_custom_call.1} parent=1 // pred_fallthru
      _
    // Predicated region
    $region30: #{tpu_custom_call.1} parent=1 // pred_check
      _
    $region31: #{tpu_custom_call.1} parent=1 // pred_check_branch
      %2025 = sbr.rel (0) target = $region33
    $region32: #{tpu_custom_call.1} parent=1 // pred_region
      %s2027 = ssub.s32 256, 256
      %2028 = vsyncadd [#allocation7], %s2027
      %s2029 = sshll.u32 [#allocation6], 4
      %s2030 = int_to_ptr.vmem [resolvable:$true] %s2029
      %2035 = dma.vmem_to_hbm [thread:$0]  %s2030, 256, %s6, [#allocation7], 128, 128, 8
    $region33: #{tpu_custom_call.1} parent=1 // pred_fallthru
      _
    // Predicated region
    $region34: #{tpu_custom_call.1} parent=1 // pred_check
      _
    $region35: #{tpu_custom_call.1} parent=1 // pred_check_branch
      %2037 = sbr.rel (0) target = $region37
    $region36: #{tpu_custom_call.1} parent=1 // pred_region
      %2038 = dma.done [#allocation4], 256
    $region37: #{tpu_custom_call.1} parent=1 // pred_fallthru
      _
    // Predicated region
    $region38: #{tpu_custom_call.1} parent=1 // pred_check
      _
    $region39: #{tpu_custom_call.1} parent=1 // pred_check_branch
      %2040 = sbr.rel (0) target = $region41
    $region40: #{tpu_custom_call.1} parent=1 // pred_region
      %2041 = dma.done [#allocation7], 256
    $region41: #{tpu_custom_call.1} parent=1 // pred_fallthru
      _
    %2042 = vsyncpa [#allocation3], 1
    %2043 = vsyncpa [#allocation4], 1
    %2044 = vsyncpa [#allocation7], 1

</llo_original>
